<compile_context>
chip_gen: v5e
topology: v5e:2x2
jax: 0.10.0
libtpu: 0.0.40
codegen_flags: <defaults>
</compile_context>

<pallas_src>
import functools

import jax
import jax.numpy as jnp
import numpy as np
from jax import lax
from jax.experimental import pallas as pl
from jax.experimental.pallas import tpu as pltpu

# Small, self-consistent shapes (scaled down from EMBEDDING_DIM=100, hidden=512).
EMBEDDING_DIM = 32
HIDDEN = 32                 # encoder hidden size; decoder hidden = 2 * HIDDEN
VOCAB = 64
PAD = 0

W_ENC = 4 * HIDDEN          # encoder packed gate width = 128 (one lane group)
W_DEC = 4 * (2 * HIDDEN)    # decoder packed gate width = 256
OUT_LANES = 128             # vocab padded to 128 lanes for a lane-dense store
BATCH_PAD = 8               # batch padded to a full sublane group


# ---------------------------------------------------------------------------
# Fused kernel: BiLSTM encoder + fc/relu + LSTM decoder + vocab projection.
# State layout per direction (width = packed gate width, blocks of `hidden` lanes):
#   real c at block 1 (lanes [H, 2H)), real h at block 3 (lanes [3H, 4H)).
# All weight rows multiplying non-real lanes are zero-padded, so garbage lanes in
# the state vectors can never contaminate a real output.
# ---------------------------------------------------------------------------
def fused_lm_kernel(x1_ref, x2_ref, enc_wih_ref, enc_whh_ref, fc_w_ref,
                    dec_wih_ref, dec_whh_ref, out_w_ref, bias_ref, out_ref,
                    *, batch_p, t_enc, t_dec):
    B = batch_p
    H1, H2 = HIDDEN, 2 * HIDDEN
    W1, W2 = W_ENC, W_DEC
    bf16 = jnp.bfloat16

    bias = bias_ref[...]                      # (4, 256) f32
    enc_b = bias[0:1, :]                      # fused fwd|bwd input bias (1, 2*W1)
    dec_b = bias[1:2, :]                      # (1, W2)
    fc_b = bias[2:3, :]                       # (1, W2), real lanes at block 3
    out_b = bias[3:4, :OUT_LANES]             # (1, 128)

    # g-gate lane masks (tanh for g, sigmoid for i/f/o); built once, reused per step.
    lane1 = lax.broadcasted_iota(jnp.int32, (B, W1), 1)
    gmask1 = (lane1 >= 2 * H1) & (lane1 < 3 * H1)
    lane2 = lax.broadcasted_iota(jnp.int32, (B, W2), 1)
    gmask2 = (lane2 >= 2 * H2) & (lane2 < 3 * H2)

    def cell_from_gates(gates, c_vec, gmask, hsz):
        # One EUP tanh covers all four gates: sigmoid(x) = 0.5*(tanh(x/2) + 1).
        th = jnp.tanh(jnp.where(gmask, gates, 0.5 * gates))
        act = jnp.where(gmask, th, 0.5 * th + 0.5)       # [sig i | sig f | tanh g | sig o]
        # blocks of prod = [i*g, f*o, i*g, f*o]  (period 2*hsz -> roll-direction safe)
        prod = act * pltpu.roll(act, 2 * hsz, axis=1)
        # roll by hsz lands i*g on block 1 (where c lives), either roll direction.
        c_new = act * c_vec + pltpu.roll(prod, hsz, axis=1)          # block 1: f*c + i*g
        # roll by 2*hsz (half width) lands c on block 3 (where o and h live).
        h_new = act * jnp.tanh(pltpu.roll(c_new, 2 * hsz, axis=1))   # block 3: o*tanh(c)
        return h_new, c_new

    def cell(xg, h_vec, c_vec, whh, gmask, hsz):
        gates = xg + jnp.dot(h_vec.astype(bf16), whh,
                             preferred_element_type=jnp.float32)
        return cell_from_gates(gates, c_vec, gmask, hsz)

    zeros1 = jnp.zeros((B, W1), jnp.float32)

    # ---- encoder: fwd|bwd input projections hoisted & fused into one matmul ------
    xg1 = (jnp.dot(x1_ref[...], enc_wih_ref[...],
                   preferred_element_type=jnp.float32) + enc_b)      # (T1*B, 2*W1)
    enc_whh = enc_whh_ref[...]

    # forward direction; t = 0 starts from zero state -> skip the h @ W_hh matmul
    h_f, c_f = cell_from_gates(xg1[0:B, 0:W1], zeros1, gmask1, H1)
    for t in range(1, t_enc):                                        # fully unrolled
        h_f, c_f = cell(xg1[t * B:(t + 1) * B, 0:W1], h_f, c_f, enc_whh, gmask1, H1)

    # backward direction: states[:, -1, H:] == one reverse step from zero state
    # (so its recurrent weights are never needed).
    h_b, _ = cell_from_gates(xg1[(t_enc - 1) * B:t_enc * B, W1:2 * W1],
                             zeros1, gmask1, H1)

    # ---- fc + relu: z lands directly on the decoder's h block (lanes [3H2,4H2)) ---
    hcat = jnp.concatenate([h_f, h_b], axis=1)                       # (B, 2*W1)
    z = jnp.maximum(
        jnp.dot(hcat.astype(bf16), fc_w_ref[...],
                preferred_element_type=jnp.float32) + fc_b, 0.0)     # (B, W2)

    # ---- decoder: hoisted input projection, h_t kept live in registers -----------
    xg2 = (jnp.dot(x2_ref[...], dec_wih_ref[...],
                   preferred_element_type=jnp.float32) + dec_b)      # (T2*B, W2)
    dec_whh = dec_whh_ref[...]
    h_d, c_d = z, jnp.zeros((B, W2), jnp.float32)
    hs = []
    for t in range(t_dec):                                           # fully unrolled
        h_d, c_d = cell(xg2[t * B:(t + 1) * B, :], h_d, c_d, dec_whh, gmask2, H2)
        hs.append(h_d)

    # ---- vocab projection: one matmul, one lane-dense (128-wide) store -----------
    hs_all = jnp.concatenate(hs, axis=0)                             # (T2*B, W2)
    out_ref[...] = (jnp.dot(hs_all.astype(bf16), out_w_ref[...],
                            preferred_element_type=jnp.float32) + out_b)


# ---------------------------------------------------------------------------
# Wrappers
# ---------------------------------------------------------------------------
def _vmem_spec():
    return pl.BlockSpec(memory_space=pltpu.MemorySpace.VMEM)


def fused_forward_pallas(x1_tm, x2_tm, pp, batch_p, t_enc, t_dec):
    kernel = functools.partial(fused_lm_kernel, batch_p=batch_p,
                               t_enc=t_enc, t_dec=t_dec)
    return pl.pallas_call(
        kernel,
        out_shape=jax.ShapeDtypeStruct((t_dec * batch_p, OUT_LANES), jnp.float32),
        in_specs=[_vmem_spec() for _ in range(9)],
        out_specs=_vmem_spec(),
    )(x1_tm, x2_tm, pp["enc_wih"], pp["enc_whh"], pp["fc_w"],
      pp["dec_wih"], pp["dec_whh"], pp["out_w"], pp["bias"])


def lstm_lm_bowman_forward(padded_params, encoder_input, decoder_input):
    # Embedding gathers are glue (plain JAX); the kernel gets dense, time-major,
    # batch-padded (8 sublanes) bf16 activations so every per-timestep slice is a
    # full aligned vreg group.
    emb = padded_params["emb"]
    xx1 = emb[encoder_input]                                    # (B, T1, E)
    xx2 = emb[decoder_input]                                    # (B, T2, E)
    B, T1, E = xx1.shape
    T2 = xx2.shape[1]
    BP = ((B + BATCH_PAD - 1) // BATCH_PAD) * BATCH_PAD

    x1 = (jnp.zeros((T1, BP, E), jnp.float32)
          .at[:, :B, :].set(jnp.transpose(xx1, (1, 0, 2)))
          .reshape(T1 * BP, E).astype(jnp.bfloat16))
    x2 = (jnp.zeros((T2, BP, E), jnp.float32)
          .at[:, :B, :].set(jnp.transpose(xx2, (1, 0, 2)))
          .reshape(T2 * BP, E).astype(jnp.bfloat16))

    out = fused_forward_pallas(x1, x2, padded_params, BP, T1, T2)  # (T2*BP, 128)
    logits = jnp.transpose(out.reshape(T2, BP, OUT_LANES)[:, :B, :VOCAB], (1, 0, 2))

    kld = jnp.zeros((1,), jnp.float32)                           # torch.zeros(1)
    return logits, None, kld


# ---------------------------------------------------------------------------
# Parameter repacking into the kernel's packed / zero-padded bf16 layout.
# ---------------------------------------------------------------------------
def pad_params(p):
    H, H2 = HIDDEN, 2 * HIDDEN
    W1, W2 = W_ENC, W_DEC
    f32, bf16 = jnp.float32, jnp.bfloat16

    # Encoder recurrent weights: real h lives at lanes [3H, 4H) ("block 3").
    enc_whh = (jnp.zeros((W1, W1), f32)
               .at[3 * H:4 * H, :].set(p["enc_whh_f"]).astype(bf16))
    # Fused forward|backward input projection (backward runs a single zero-state
    # step, so enc_whh_b is mathematically unused and not shipped to the kernel).
    enc_wih = jnp.concatenate([p["enc_wih_f"], p["enc_wih_b"]], axis=1).astype(bf16)

    # fc: rows pick the real-h lanes of [h_fwd | h_bwd]; cols land on the decoder's
    # h block (lanes [3*H2, 4*H2)).
    fc_w = jnp.zeros((2 * W1, W2), f32)
    fc_w = fc_w.at[3 * H:4 * H, 3 * H2:4 * H2].set(p["fc_w"][:H, :])
    fc_w = fc_w.at[W1 + 3 * H:W1 + 4 * H, 3 * H2:4 * H2].set(p["fc_w"][H:, :])
    fc_w = fc_w.astype(bf16)

    dec_wih = p["dec_wih"].astype(bf16)                   # (E, W2) — no padding needed
    dec_whh = (jnp.zeros((W2, W2), f32)
               .at[3 * H2:4 * H2, :].set(p["dec_whh"]).astype(bf16))
    out_w = (jnp.zeros((W2, OUT_LANES), f32)
             .at[3 * H2:4 * H2, :VOCAB].set(p["out_w"]).astype(bf16))

    # All six tiny biases packed into one (4, W2) f32 buffer: one DMA instead of six.
    bias = jnp.zeros((4, W2), f32)
    bias = bias.at[0, :W1].set(p["enc_b_f"][0])
    bias = bias.at[0, W1:2 * W1].set(p["enc_b_b"][0])
    bias = bias.at[1, :].set(p["dec_b"][0])
    bias = bias.at[2, 3 * H2:4 * H2].set(p["fc_b"][0])
    bias = bias.at[3, :VOCAB].set(p["out_b"][0])

    return dict(emb=p["emb"], enc_wih=enc_wih, enc_whh=enc_whh, fc_w=fc_w,
                dec_wih=dec_wih, dec_whh=dec_whh, out_w=out_w, bias=bias)


# ---------------------------------------------------------------------------
# Deterministic parameter init (weights stored pre-transposed as (in, out);
# LSTM biases are stored already summed: b_ih + b_hh).
# ---------------------------------------------------------------------------
def init_params(key):
    H, H2, E, V = HIDDEN, 2 * HIDDEN, EMBEDDING_DIM, VOCAB
    ks = jax.random.split(key, 14)

    def u(k, shape, bound):
        return jax.random.uniform(k, shape, jnp.float32, -bound, bound)

    s_enc = 1.0 / np.sqrt(H)
    s_dec = 1.0 / np.sqrt(H2)
    s_lin = 1.0 / np.sqrt(H2)

    emb = jax.random.normal(ks[0], (V, E), jnp.float32)
    emb = emb.at[PAD].set(0.0)                        # padding_idx=PAD

    return dict(
        emb=emb,
        enc_wih_f=u(ks[1], (E, 4 * H), s_enc),
        enc_whh_f=u(ks[2], (H, 4 * H), s_enc),
        enc_b_f=u(ks[3], (1, 4 * H), s_enc),
        enc_wih_b=u(ks[4], (E, 4 * H), s_enc),
        enc_whh_b=u(ks[5], (H, 4 * H), s_enc),
        enc_b_b=u(ks[6], (1, 4 * H), s_enc),
        fc_w=u(ks[7], (H2, H2), s_lin),
        fc_b=u(ks[8], (1, H2), s_lin),
        dec_wih=u(ks[9], (E, 4 * H2), s_dec),
        dec_whh=u(ks[10], (H2, 4 * H2), s_dec),
        dec_b=u(ks[11], (1, 4 * H2), s_dec),
        out_w=u(ks[12], (H2, V), s_lin),
        out_b=u(ks[13], (1, V), s_lin),
    )


# ---------------------------------------------------------------------------
# Pure-JAX reference (raw, unpadded f32 params) for validation.
# ---------------------------------------------------------------------------
def _lstm_scan(x_tm, h0, c0, wih, whh, b):
    H = h0.shape[-1]

    def step(carry, x_t):
        h, c = carry
        gates = x_t @ wih + h @ whh + b
        i = jax.nn.sigmoid(gates[:, :H])
        f = jax.nn.sigmoid(gates[:, H:2 * H])
        g = jnp.tanh(gates[:, 2 * H:3 * H])
        o = jax.nn.sigmoid(gates[:, 3 * H:])
        c = f * c + i * g
        h = o * jnp.tanh(c)
        return (h, c), h

    (_, _), hs = lax.scan(step, (h0, c0), x_tm)
    return hs


def reference_forward(params, encoder_input, decoder_input):
    H, H2 = HIDDEN, 2 * HIDDEN
    xx1 = params["emb"][encoder_input]
    xx2 = params["emb"][decoder_input]
    x1_tm = jnp.transpose(xx1, (1, 0, 2))
    x2_tm = jnp.transpose(xx2, (1, 0, 2))
    B = xx1.shape[0]
    z0 = jnp.zeros((B, H), jnp.float32)

    hs_f = _lstm_scan(x1_tm, z0, z0, params["enc_wih_f"], params["enc_whh_f"],
                      params["enc_b_f"])
    hs_b = _lstm_scan(x1_tm[::-1], z0, z0, params["enc_wih_b"],
                      params["enc_whh_b"], params["enc_b_b"])[::-1]
    states_last = jnp.concatenate([hs_f[-1], hs_b[-1]], axis=-1)
    z = jnp.maximum(states_last @ params["fc_w"] + params["fc_b"], 0.0)

    z0d = jnp.zeros((B, H2), jnp.float32)
    hs_d = _lstm_scan(x2_tm, z, z0d, params["dec_wih"], params["dec_whh"],
                      params["dec_b"])
    logits_tm = hs_d @ params["out_w"] + params["out_b"]
    return jnp.transpose(logits_tm, (1, 0, 2))


if __name__ == "__main__":
    B, T_ENC, T_DEC = 2, 8, 8
    key = jax.random.PRNGKey(0)
    k_param, k_enc, k_dec = jax.random.split(key, 3)

    params = init_params(k_param)
    padded = pad_params(params)
    encoder_input = jax.random.randint(k_enc, (B, T_ENC), 0, VOCAB, jnp.int32)
    decoder_input = jax.random.randint(k_dec, (B, T_DEC), 0, VOCAB, jnp.int32)

    fwd = jax.jit(lstm_lm_bowman_forward)
    logits, none_out, kld = fwd(padded, encoder_input, decoder_input)
    jax.block_until_ready(logits)
    jax.block_until_ready(kld)

    assert logits.shape == (B, T_DEC, VOCAB)
    assert none_out is None
    assert kld.shape == (1,)

    # bf16 MXU operands (f32 accumulate / f32 gate math) => slightly looser tolerance
    # than a pure-f32 run; errors observed/estimated are O(1e-3), well inside 2e-2.
    ref_logits = reference_forward(params, encoder_input, decoder_input)
    np.testing.assert_allclose(np.asarray(logits), np.asarray(ref_logits),
                               rtol=2e-2, atol=2e-2)

    # TODO(synk): variable-length / pack_padded_sequence masking is not modeled
    # (the PyTorch module as written does not use it either).
    print("KERNEL_OK")
</pallas_src>

<mosaic_0001>
module attributes {stable_mosaic.version = 11 : i64} {
  func.func @fused_lm_kernel(%arg0: memref<64x32xbf16, #tpu.memory_space<vmem>>, %arg1: memref<64x32xbf16, #tpu.memory_space<vmem>>, %arg2: memref<32x256xbf16, #tpu.memory_space<vmem>>, %arg3: memref<128x128xbf16, #tpu.memory_space<vmem>>, %arg4: memref<256x256xbf16, #tpu.memory_space<vmem>>, %arg5: memref<32x256xbf16, #tpu.memory_space<vmem>>, %arg6: memref<256x256xbf16, #tpu.memory_space<vmem>>, %arg7: memref<256x128xbf16, #tpu.memory_space<vmem>>, %arg8: memref<4x256xf32, #tpu.memory_space<vmem>>, %arg9: memref<64x128xf32, #tpu.memory_space<vmem>>) attributes {dimension_semantics = [], scalar_prefetch = 0 : i64, scratch_operands = 0 : i64, tpu.core_type = #tpu.core_type<tc>} {
    %c0 = arith.constant 0 : index
    %c0_0 = arith.constant 0 : index
    %0 = vector.load %arg8[%c0, %c0_0] : memref<4x256xf32, #tpu.memory_space<vmem>>, vector<4x256xf32>
    %1 = vector.extract_strided_slice %0 {offsets = [0, 0], sizes = [1, 256], strides = [1, 1]} : vector<4x256xf32> to vector<1x256xf32>
    %2 = vector.extract_strided_slice %0 {offsets = [1, 0], sizes = [1, 256], strides = [1, 1]} : vector<4x256xf32> to vector<1x256xf32>
    %3 = vector.extract_strided_slice %0 {offsets = [2, 0], sizes = [1, 256], strides = [1, 1]} : vector<4x256xf32> to vector<1x256xf32>
    %4 = vector.extract_strided_slice %0 {offsets = [3, 0], sizes = [1, 128], strides = [1, 1]} : vector<4x256xf32> to vector<1x128xf32>
    %5 = tpu.iota {dimensions = array<i32: 1>} : vector<8x128xi32>
    %c64_i32 = arith.constant 64 : i32
    %6 = vector.broadcast %c64_i32 : i32 to vector<8x128xi32>
    %7 = arith.cmpi sge, %5, %6 : vector<8x128xi32>
    %c96_i32 = arith.constant 96 : i32
    %8 = vector.broadcast %c96_i32 : i32 to vector<8x128xi32>
    %9 = arith.cmpi slt, %5, %8 : vector<8x128xi32>
    %10 = arith.andi %7, %9 : vector<8x128xi1>
    %11 = tpu.iota {dimensions = array<i32: 1>} : vector<8x256xi32>
    %c128_i32 = arith.constant 128 : i32
    %12 = vector.broadcast %c128_i32 : i32 to vector<8x256xi32>
    %13 = arith.cmpi sge, %11, %12 : vector<8x256xi32>
    %c192_i32 = arith.constant 192 : i32
    %14 = vector.broadcast %c192_i32 : i32 to vector<8x256xi32>
    %15 = arith.cmpi slt, %11, %14 : vector<8x256xi32>
    %16 = arith.andi %13, %15 : vector<8x256xi1>
    %cst = arith.constant 0.000000e+00 : f32
    %17 = vector.broadcast %cst : f32 to vector<8x128xf32>
    %c0_1 = arith.constant 0 : index
    %c0_2 = arith.constant 0 : index
    %18 = vector.load %arg0[%c0_1, %c0_2] : memref<64x32xbf16, #tpu.memory_space<vmem>>, vector<64x32xbf16>
    %c0_3 = arith.constant 0 : index
    %c0_4 = arith.constant 0 : index
    %19 = vector.load %arg2[%c0_3, %c0_4] : memref<32x256xbf16, #tpu.memory_space<vmem>>, vector<32x256xbf16>
    %cst_5 = arith.constant dense<0.000000e+00> : vector<64x256xf32>
    %20 = tpu.matmul %18, %19, %cst_5 {dimension_numbers = #tpu.dot_dimension_numbers<[1], [0], [0], [1], [0, 0, 1, 1], [], []>} : vector<64x32xbf16>, vector<32x256xbf16>, vector<64x256xf32> -> vector<64x256xf32>
    %21 = vector.broadcast %1 : vector<1x256xf32> to vector<64x256xf32>
    %22 = arith.addf %20, %21 : vector<64x256xf32>
    %c0_6 = arith.constant 0 : index
    %c0_7 = arith.constant 0 : index
    %23 = vector.load %arg3[%c0_6, %c0_7] : memref<128x128xbf16, #tpu.memory_space<vmem>>, vector<128x128xbf16>
    %24 = vector.extract_strided_slice %22 {offsets = [0, 0], sizes = [8, 128], strides = [1, 1]} : vector<64x256xf32> to vector<8x128xf32>
    %cst_8 = arith.constant 5.000000e-01 : f32
    %25 = vector.broadcast %cst_8 : f32 to vector<8x128xf32>
    %26 = arith.mulf %25, %24 : vector<8x128xf32>
    %27 = arith.select %10, %24, %26 : vector<8x128xi1>, vector<8x128xf32>
    %28 = math.tanh %27 : vector<8x128xf32>
    %cst_9 = arith.constant 5.000000e-01 : f32
    %29 = vector.broadcast %cst_9 : f32 to vector<8x128xf32>
    %30 = arith.mulf %29, %28 : vector<8x128xf32>
    %cst_10 = arith.constant 5.000000e-01 : f32
    %31 = vector.broadcast %cst_10 : f32 to vector<8x128xf32>
    %32 = arith.addf %30, %31 : vector<8x128xf32>
    %33 = arith.select %10, %28, %32 : vector<8x128xi1>, vector<8x128xf32>
    %c64_i32_11 = arith.constant 64 : i32
    %34 = tpu.dynamic_rotate %33 by %c64_i32_11 dim 1 : vector<8x128xf32>, i32 -> vector<8x128xf32>
    %35 = arith.mulf %33, %34 : vector<8x128xf32>
    %36 = arith.mulf %33, %17 : vector<8x128xf32>
    %c32_i32 = arith.constant 32 : i32
    %37 = tpu.dynamic_rotate %35 by %c32_i32 dim 1 : vector<8x128xf32>, i32 -> vector<8x128xf32>
    %38 = arith.addf %36, %37 : vector<8x128xf32>
    %c64_i32_12 = arith.constant 64 : i32
    %39 = tpu.dynamic_rotate %38 by %c64_i32_12 dim 1 : vector<8x128xf32>, i32 -> vector<8x128xf32>
    %40 = math.tanh %39 : vector<8x128xf32>
    %41 = arith.mulf %33, %40 : vector<8x128xf32>
    %42 = vector.extract_strided_slice %22 {offsets = [8, 0], sizes = [8, 128], strides = [1, 1]} : vector<64x256xf32> to vector<8x128xf32>
    %43 = arith.truncf %41 : vector<8x128xf32> to vector<8x128xbf16>
    %cst_13 = arith.constant dense<0.000000e+00> : vector<8x128xf32>
    %44 = tpu.matmul %43, %23, %cst_13 {dimension_numbers = #tpu.dot_dimension_numbers<[1], [0], [0], [1], [0, 0, 1, 1], [], []>} : vector<8x128xbf16>, vector<128x128xbf16>, vector<8x128xf32> -> vector<8x128xf32>
    %45 = arith.addf %42, %44 : vector<8x128xf32>
    %cst_14 = arith.constant 5.000000e-01 : f32
    %46 = vector.broadcast %cst_14 : f32 to vector<8x128xf32>
    %47 = arith.mulf %46, %45 : vector<8x128xf32>
    %48 = arith.select %10, %45, %47 : vector<8x128xi1>, vector<8x128xf32>
    %49 = math.tanh %48 : vector<8x128xf32>
    %cst_15 = arith.constant 5.000000e-01 : f32
    %50 = vector.broadcast %cst_15 : f32 to vector<8x128xf32>
    %51 = arith.mulf %50, %49 : vector<8x128xf32>
    %cst_16 = arith.constant 5.000000e-01 : f32
    %52 = vector.broadcast %cst_16 : f32 to vector<8x128xf32>
    %53 = arith.addf %51, %52 : vector<8x128xf32>
    %54 = arith.select %10, %49, %53 : vector<8x128xi1>, vector<8x128xf32>
    %c64_i32_17 = arith.constant 64 : i32
    %55 = tpu.dynamic_rotate %54 by %c64_i32_17 dim 1 : vector<8x128xf32>, i32 -> vector<8x128xf32>
    %56 = arith.mulf %54, %55 : vector<8x128xf32>
    %57 = arith.mulf %54, %38 : vector<8x128xf32>
    %c32_i32_18 = arith.constant 32 : i32
    %58 = tpu.dynamic_rotate %56 by %c32_i32_18 dim 1 : vector<8x128xf32>, i32 -> vector<8x128xf32>
    %59 = arith.addf %57, %58 : vector<8x128xf32>
    %c64_i32_19 = arith.constant 64 : i32
    %60 = tpu.dynamic_rotate %59 by %c64_i32_19 dim 1 : vector<8x128xf32>, i32 -> vector<8x128xf32>
    %61 = math.tanh %60 : vector<8x128xf32>
    %62 = arith.mulf %54, %61 : vector<8x128xf32>
    %63 = vector.extract_strided_slice %22 {offsets = [16, 0], sizes = [8, 128], strides = [1, 1]} : vector<64x256xf32> to vector<8x128xf32>
    %64 = arith.truncf %62 : vector<8x128xf32> to vector<8x128xbf16>
    %cst_20 = arith.constant dense<0.000000e+00> : vector<8x128xf32>
    %65 = tpu.matmul %64, %23, %cst_20 {dimension_numbers = #tpu.dot_dimension_numbers<[1], [0], [0], [1], [0, 0, 1, 1], [], []>} : vector<8x128xbf16>, vector<128x128xbf16>, vector<8x128xf32> -> vector<8x128xf32>
    %66 = arith.addf %63, %65 : vector<8x128xf32>
    %cst_21 = arith.constant 5.000000e-01 : f32
    %67 = vector.broadcast %cst_21 : f32 to vector<8x128xf32>
    %68 = arith.mulf %67, %66 : vector<8x128xf32>
    %69 = arith.select %10, %66, %68 : vector<8x128xi1>, vector<8x128xf32>
    %70 = math.tanh %69 : vector<8x128xf32>
    %cst_22 = arith.constant 5.000000e-01 : f32
    %71 = vector.broadcast %cst_22 : f32 to vector<8x128xf32>
    %72 = arith.mulf %71, %70 : vector<8x128xf32>
    %cst_23 = arith.constant 5.000000e-01 : f32
    %73 = vector.broadcast %cst_23 : f32 to vector<8x128xf32>
    %74 = arith.addf %72, %73 : vector<8x128xf32>
    %75 = arith.select %10, %70, %74 : vector<8x128xi1>, vector<8x128xf32>
    %c64_i32_24 = arith.constant 64 : i32
    %76 = tpu.dynamic_rotate %75 by %c64_i32_24 dim 1 : vector<8x128xf32>, i32 -> vector<8x128xf32>
    %77 = arith.mulf %75, %76 : vector<8x128xf32>
    %78 = arith.mulf %75, %59 : vector<8x128xf32>
    %c32_i32_25 = arith.constant 32 : i32
    %79 = tpu.dynamic_rotate %77 by %c32_i32_25 dim 1 : vector<8x128xf32>, i32 -> vector<8x128xf32>
    %80 = arith.addf %78, %79 : vector<8x128xf32>
    %c64_i32_26 = arith.constant 64 : i32
    %81 = tpu.dynamic_rotate %80 by %c64_i32_26 dim 1 : vector<8x128xf32>, i32 -> vector<8x128xf32>
    %82 = math.tanh %81 : vector<8x128xf32>
    %83 = arith.mulf %75, %82 : vector<8x128xf32>
    %84 = vector.extract_strided_slice %22 {offsets = [24, 0], sizes = [8, 128], strides = [1, 1]} : vector<64x256xf32> to vector<8x128xf32>
    %85 = arith.truncf %83 : vector<8x128xf32> to vector<8x128xbf16>
    %cst_27 = arith.constant dense<0.000000e+00> : vector<8x128xf32>
    %86 = tpu.matmul %85, %23, %cst_27 {dimension_numbers = #tpu.dot_dimension_numbers<[1], [0], [0], [1], [0, 0, 1, 1], [], []>} : vector<8x128xbf16>, vector<128x128xbf16>, vector<8x128xf32> -> vector<8x128xf32>
    %87 = arith.addf %84, %86 : vector<8x128xf32>
    %cst_28 = arith.constant 5.000000e-01 : f32
    %88 = vector.broadcast %cst_28 : f32 to vector<8x128xf32>
    %89 = arith.mulf %88, %87 : vector<8x128xf32>
    %90 = arith.select %10, %87, %89 : vector<8x128xi1>, vector<8x128xf32>
    %91 = math.tanh %90 : vector<8x128xf32>
    %cst_29 = arith.constant 5.000000e-01 : f32
    %92 = vector.broadcast %cst_29 : f32 to vector<8x128xf32>
    %93 = arith.mulf %92, %91 : vector<8x128xf32>
    %cst_30 = arith.constant 5.000000e-01 : f32
    %94 = vector.broadcast %cst_30 : f32 to vector<8x128xf32>
    %95 = arith.addf %93, %94 : vector<8x128xf32>
    %96 = arith.select %10, %91, %95 : vector<8x128xi1>, vector<8x128xf32>
    %c64_i32_31 = arith.constant 64 : i32
    %97 = tpu.dynamic_rotate %96 by %c64_i32_31 dim 1 : vector<8x128xf32>, i32 -> vector<8x128xf32>
    %98 = arith.mulf %96, %97 : vector<8x128xf32>
    %99 = arith.mulf %96, %80 : vector<8x128xf32>
    %c32_i32_32 = arith.constant 32 : i32
    %100 = tpu.dynamic_rotate %98 by %c32_i32_32 dim 1 : vector<8x128xf32>, i32 -> vector<8x128xf32>
    %101 = arith.addf %99, %100 : vector<8x128xf32>
    %c64_i32_33 = arith.constant 64 : i32
    %102 = tpu.dynamic_rotate %101 by %c64_i32_33 dim 1 : vector<8x128xf32>, i32 -> vector<8x128xf32>
    %103 = math.tanh %102 : vector<8x128xf32>
    %104 = arith.mulf %96, %103 : vector<8x128xf32>
    %105 = vector.extract_strided_slice %22 {offsets = [32, 0], sizes = [8, 128], strides = [1, 1]} : vector<64x256xf32> to vector<8x128xf32>
    %106 = arith.truncf %104 : vector<8x128xf32> to vector<8x128xbf16>
    %cst_34 = arith.constant dense<0.000000e+00> : vector<8x128xf32>
    %107 = tpu.matmul %106, %23, %cst_34 {dimension_numbers = #tpu.dot_dimension_numbers<[1], [0], [0], [1], [0, 0, 1, 1], [], []>} : vector<8x128xbf16>, vector<128x128xbf16>, vector<8x128xf32> -> vector<8x128xf32>
    %108 = arith.addf %105, %107 : vector<8x128xf32>
    %cst_35 = arith.constant 5.000000e-01 : f32
    %109 = vector.broadcast %cst_35 : f32 to vector<8x128xf32>
    %110 = arith.mulf %109, %108 : vector<8x128xf32>
    %111 = arith.select %10, %108, %110 : vector<8x128xi1>, vector<8x128xf32>
    %112 = math.tanh %111 : vector<8x128xf32>
    %cst_36 = arith.constant 5.000000e-01 : f32
    %113 = vector.broadcast %cst_36 : f32 to vector<8x128xf32>
    %114 = arith.mulf %113, %112 : vector<8x128xf32>
    %cst_37 = arith.constant 5.000000e-01 : f32
    %115 = vector.broadcast %cst_37 : f32 to vector<8x128xf32>
    %116 = arith.addf %114, %115 : vector<8x128xf32>
    %117 = arith.select %10, %112, %116 : vector<8x128xi1>, vector<8x128xf32>
    %c64_i32_38 = arith.constant 64 : i32
    %118 = tpu.dynamic_rotate %117 by %c64_i32_38 dim 1 : vector<8x128xf32>, i32 -> vector<8x128xf32>
    %119 = arith.mulf %117, %118 : vector<8x128xf32>
    %120 = arith.mulf %117, %101 : vector<8x128xf32>
    %c32_i32_39 = arith.constant 32 : i32
    %121 = tpu.dynamic_rotate %119 by %c32_i32_39 dim 1 : vector<8x128xf32>, i32 -> vector<8x128xf32>
    %122 = arith.addf %120, %121 : vector<8x128xf32>
    %c64_i32_40 = arith.constant 64 : i32
    %123 = tpu.dynamic_rotate %122 by %c64_i32_40 dim 1 : vector<8x128xf32>, i32 -> vector<8x128xf32>
    %124 = math.tanh %123 : vector<8x128xf32>
    %125 = arith.mulf %117, %124 : vector<8x128xf32>
    %126 = vector.extract_strided_slice %22 {offsets = [40, 0], sizes = [8, 128], strides = [1, 1]} : vector<64x256xf32> to vector<8x128xf32>
    %127 = arith.truncf %125 : vector<8x128xf32> to vector<8x128xbf16>
    %cst_41 = arith.constant dense<0.000000e+00> : vector<8x128xf32>
    %128 = tpu.matmul %127, %23, %cst_41 {dimension_numbers = #tpu.dot_dimension_numbers<[1], [0], [0], [1], [0, 0, 1, 1], [], []>} : vector<8x128xbf16>, vector<128x128xbf16>, vector<8x128xf32> -> vector<8x128xf32>
    %129 = arith.addf %126, %128 : vector<8x128xf32>
    %cst_42 = arith.constant 5.000000e-01 : f32
    %130 = vector.broadcast %cst_42 : f32 to vector<8x128xf32>
    %131 = arith.mulf %130, %129 : vector<8x128xf32>
    %132 = arith.select %10, %129, %131 : vector<8x128xi1>, vector<8x128xf32>
    %133 = math.tanh %132 : vector<8x128xf32>
    %cst_43 = arith.constant 5.000000e-01 : f32
    %134 = vector.broadcast %cst_43 : f32 to vector<8x128xf32>
    %135 = arith.mulf %134, %133 : vector<8x128xf32>
    %cst_44 = arith.constant 5.000000e-01 : f32
    %136 = vector.broadcast %cst_44 : f32 to vector<8x128xf32>
    %137 = arith.addf %135, %136 : vector<8x128xf32>
    %138 = arith.select %10, %133, %137 : vector<8x128xi1>, vector<8x128xf32>
    %c64_i32_45 = arith.constant 64 : i32
    %139 = tpu.dynamic_rotate %138 by %c64_i32_45 dim 1 : vector<8x128xf32>, i32 -> vector<8x128xf32>
    %140 = arith.mulf %138, %139 : vector<8x128xf32>
    %141 = arith.mulf %138, %122 : vector<8x128xf32>
    %c32_i32_46 = arith.constant 32 : i32
    %142 = tpu.dynamic_rotate %140 by %c32_i32_46 dim 1 : vector<8x128xf32>, i32 -> vector<8x128xf32>
    %143 = arith.addf %141, %142 : vector<8x128xf32>
    %c64_i32_47 = arith.constant 64 : i32
    %144 = tpu.dynamic_rotate %143 by %c64_i32_47 dim 1 : vector<8x128xf32>, i32 -> vector<8x128xf32>
    %145 = math.tanh %144 : vector<8x128xf32>
    %146 = arith.mulf %138, %145 : vector<8x128xf32>
    %147 = vector.extract_strided_slice %22 {offsets = [48, 0], sizes = [8, 128], strides = [1, 1]} : vector<64x256xf32> to vector<8x128xf32>
    %148 = arith.truncf %146 : vector<8x128xf32> to vector<8x128xbf16>
    %cst_48 = arith.constant dense<0.000000e+00> : vector<8x128xf32>
    %149 = tpu.matmul %148, %23, %cst_48 {dimension_numbers = #tpu.dot_dimension_numbers<[1], [0], [0], [1], [0, 0, 1, 1], [], []>} : vector<8x128xbf16>, vector<128x128xbf16>, vector<8x128xf32> -> vector<8x128xf32>
    %150 = arith.addf %147, %149 : vector<8x128xf32>
    %cst_49 = arith.constant 5.000000e-01 : f32
    %151 = vector.broadcast %cst_49 : f32 to vector<8x128xf32>
    %152 = arith.mulf %151, %150 : vector<8x128xf32>
    %153 = arith.select %10, %150, %152 : vector<8x128xi1>, vector<8x128xf32>
    %154 = math.tanh %153 : vector<8x128xf32>
    %cst_50 = arith.constant 5.000000e-01 : f32
    %155 = vector.broadcast %cst_50 : f32 to vector<8x128xf32>
    %156 = arith.mulf %155, %154 : vector<8x128xf32>
    %cst_51 = arith.constant 5.000000e-01 : f32
    %157 = vector.broadcast %cst_51 : f32 to vector<8x128xf32>
    %158 = arith.addf %156, %157 : vector<8x128xf32>
    %159 = arith.select %10, %154, %158 : vector<8x128xi1>, vector<8x128xf32>
    %c64_i32_52 = arith.constant 64 : i32
    %160 = tpu.dynamic_rotate %159 by %c64_i32_52 dim 1 : vector<8x128xf32>, i32 -> vector<8x128xf32>
    %161 = arith.mulf %159, %160 : vector<8x128xf32>
    %162 = arith.mulf %159, %143 : vector<8x128xf32>
    %c32_i32_53 = arith.constant 32 : i32
    %163 = tpu.dynamic_rotate %161 by %c32_i32_53 dim 1 : vector<8x128xf32>, i32 -> vector<8x128xf32>
    %164 = arith.addf %162, %163 : vector<8x128xf32>
    %c64_i32_54 = arith.constant 64 : i32
    %165 = tpu.dynamic_rotate %164 by %c64_i32_54 dim 1 : vector<8x128xf32>, i32 -> vector<8x128xf32>
    %166 = math.tanh %165 : vector<8x128xf32>
    %167 = arith.mulf %159, %166 : vector<8x128xf32>
    %168 = vector.extract_strided_slice %22 {offsets = [56, 0], sizes = [8, 128], strides = [1, 1]} : vector<64x256xf32> to vector<8x128xf32>
    %169 = arith.truncf %167 : vector<8x128xf32> to vector<8x128xbf16>
    %cst_55 = arith.constant dense<0.000000e+00> : vector<8x128xf32>
    %170 = tpu.matmul %169, %23, %cst_55 {dimension_numbers = #tpu.dot_dimension_numbers<[1], [0], [0], [1], [0, 0, 1, 1], [], []>} : vector<8x128xbf16>, vector<128x128xbf16>, vector<8x128xf32> -> vector<8x128xf32>
    %171 = arith.addf %168, %170 : vector<8x128xf32>
    %cst_56 = arith.constant 5.000000e-01 : f32
    %172 = vector.broadcast %cst_56 : f32 to vector<8x128xf32>
    %173 = arith.mulf %172, %171 : vector<8x128xf32>
    %174 = arith.select %10, %171, %173 : vector<8x128xi1>, vector<8x128xf32>
    %175 = math.tanh %174 : vector<8x128xf32>
    %cst_57 = arith.constant 5.000000e-01 : f32
    %176 = vector.broadcast %cst_57 : f32 to vector<8x128xf32>
    %177 = arith.mulf %176, %175 : vector<8x128xf32>
    %cst_58 = arith.constant 5.000000e-01 : f32
    %178 = vector.broadcast %cst_58 : f32 to vector<8x128xf32>
    %179 = arith.addf %177, %178 : vector<8x128xf32>
    %180 = arith.select %10, %175, %179 : vector<8x128xi1>, vector<8x128xf32>
    %c64_i32_59 = arith.constant 64 : i32
    %181 = tpu.dynamic_rotate %180 by %c64_i32_59 dim 1 : vector<8x128xf32>, i32 -> vector<8x128xf32>
    %182 = arith.mulf %180, %181 : vector<8x128xf32>
    %183 = arith.mulf %180, %164 : vector<8x128xf32>
    %c32_i32_60 = arith.constant 32 : i32
    %184 = tpu.dynamic_rotate %182 by %c32_i32_60 dim 1 : vector<8x128xf32>, i32 -> vector<8x128xf32>
    %185 = arith.addf %183, %184 : vector<8x128xf32>
    %c64_i32_61 = arith.constant 64 : i32
    %186 = tpu.dynamic_rotate %185 by %c64_i32_61 dim 1 : vector<8x128xf32>, i32 -> vector<8x128xf32>
    %187 = math.tanh %186 : vector<8x128xf32>
    %188 = arith.mulf %180, %187 : vector<8x128xf32>
    %189 = vector.extract_strided_slice %22 {offsets = [56, 128], sizes = [8, 128], strides = [1, 1]} : vector<64x256xf32> to vector<8x128xf32>
    %cst_62 = arith.constant 5.000000e-01 : f32
    %190 = vector.broadcast %cst_62 : f32 to vector<8x128xf32>
    %191 = arith.mulf %190, %189 : vector<8x128xf32>
    %192 = arith.select %10, %189, %191 : vector<8x128xi1>, vector<8x128xf32>
    %193 = math.tanh %192 : vector<8x128xf32>
    %cst_63 = arith.constant 5.000000e-01 : f32
    %194 = vector.broadcast %cst_63 : f32 to vector<8x128xf32>
    %195 = arith.mulf %194, %193 : vector<8x128xf32>
    %cst_64 = arith.constant 5.000000e-01 : f32
    %196 = vector.broadcast %cst_64 : f32 to vector<8x128xf32>
    %197 = arith.addf %195, %196 : vector<8x128xf32>
    %198 = arith.select %10, %193, %197 : vector<8x128xi1>, vector<8x128xf32>
    %c64_i32_65 = arith.constant 64 : i32
    %199 = tpu.dynamic_rotate %198 by %c64_i32_65 dim 1 : vector<8x128xf32>, i32 -> vector<8x128xf32>
    %200 = arith.mulf %198, %199 : vector<8x128xf32>
    %201 = arith.mulf %198, %17 : vector<8x128xf32>
    %c32_i32_66 = arith.constant 32 : i32
    %202 = tpu.dynamic_rotate %200 by %c32_i32_66 dim 1 : vector<8x128xf32>, i32 -> vector<8x128xf32>
    %203 = arith.addf %201, %202 : vector<8x128xf32>
    %c64_i32_67 = arith.constant 64 : i32
    %204 = tpu.dynamic_rotate %203 by %c64_i32_67 dim 1 : vector<8x128xf32>, i32 -> vector<8x128xf32>
    %205 = math.tanh %204 : vector<8x128xf32>
    %206 = arith.mulf %198, %205 : vector<8x128xf32>
    %207 = tpu.concatenate %188, %206 in 1 : vector<8x128xf32>, vector<8x128xf32> -> vector<8x256xf32>
    %208 = arith.truncf %207 : vector<8x256xf32> to vector<8x256xbf16>
    %c0_68 = arith.constant 0 : index
    %c0_69 = arith.constant 0 : index
    %209 = vector.load %arg4[%c0_68, %c0_69] : memref<256x256xbf16, #tpu.memory_space<vmem>>, vector<256x256xbf16>
    %cst_70 = arith.constant dense<0.000000e+00> : vector<8x256xf32>
    %210 = tpu.matmul %208, %209, %cst_70 {dimension_numbers = #tpu.dot_dimension_numbers<[1], [0], [0], [1], [0, 0, 1, 1], [], []>} : vector<8x256xbf16>, vector<256x256xbf16>, vector<8x256xf32> -> vector<8x256xf32>
    %211 = vector.broadcast %3 : vector<1x256xf32> to vector<8x256xf32>
    %212 = arith.addf %210, %211 : vector<8x256xf32>
    %cst_71 = arith.constant 0.000000e+00 : f32
    %213 = vector.broadcast %cst_71 : f32 to vector<8x256xf32>
    %214 = arith.maximumf %212, %213 : vector<8x256xf32>
    %c0_72 = arith.constant 0 : index
    %c0_73 = arith.constant 0 : index
    %215 = vector.load %arg1[%c0_72, %c0_73] : memref<64x32xbf16, #tpu.memory_space<vmem>>, vector<64x32xbf16>
    %c0_74 = arith.constant 0 : index
    %c0_75 = arith.constant 0 : index
    %216 = vector.load %arg5[%c0_74, %c0_75] : memref<32x256xbf16, #tpu.memory_space<vmem>>, vector<32x256xbf16>
    %cst_76 = arith.constant dense<0.000000e+00> : vector<64x256xf32>
    %217 = tpu.matmul %215, %216, %cst_76 {dimension_numbers = #tpu.dot_dimension_numbers<[1], [0], [0], [1], [0, 0, 1, 1], [], []>} : vector<64x32xbf16>, vector<32x256xbf16>, vector<64x256xf32> -> vector<64x256xf32>
    %218 = vector.broadcast %2 : vector<1x256xf32> to vector<64x256xf32>
    %219 = arith.addf %217, %218 : vector<64x256xf32>
    %c0_77 = arith.constant 0 : index
    %c0_78 = arith.constant 0 : index
    %220 = vector.load %arg6[%c0_77, %c0_78] : memref<256x256xbf16, #tpu.memory_space<vmem>>, vector<256x256xbf16>
    %cst_79 = arith.constant 0.000000e+00 : f32
    %221 = vector.broadcast %cst_79 : f32 to vector<8x256xf32>
    %222 = vector.extract_strided_slice %219 {offsets = [0, 0], sizes = [8, 256], strides = [1, 1]} : vector<64x256xf32> to vector<8x256xf32>
    %223 = arith.truncf %214 : vector<8x256xf32> to vector<8x256xbf16>
    %cst_80 = arith.constant dense<0.000000e+00> : vector<8x256xf32>
    %224 = tpu.matmul %223, %220, %cst_80 {dimension_numbers = #tpu.dot_dimension_numbers<[1], [0], [0], [1], [0, 0, 1, 1], [], []>} : vector<8x256xbf16>, vector<256x256xbf16>, vector<8x256xf32> -> vector<8x256xf32>
    %225 = arith.addf %222, %224 : vector<8x256xf32>
    %cst_81 = arith.constant 5.000000e-01 : f32
    %226 = vector.broadcast %cst_81 : f32 to vector<8x256xf32>
    %227 = arith.mulf %226, %225 : vector<8x256xf32>
    %228 = arith.select %16, %225, %227 : vector<8x256xi1>, vector<8x256xf32>
    %229 = math.tanh %228 : vector<8x256xf32>
    %cst_82 = arith.constant 5.000000e-01 : f32
    %230 = vector.broadcast %cst_82 : f32 to vector<8x256xf32>
    %231 = arith.mulf %230, %229 : vector<8x256xf32>
    %cst_83 = arith.constant 5.000000e-01 : f32
    %232 = vector.broadcast %cst_83 : f32 to vector<8x256xf32>
    %233 = arith.addf %231, %232 : vector<8x256xf32>
    %234 = arith.select %16, %229, %233 : vector<8x256xi1>, vector<8x256xf32>
    %c128_i32_84 = arith.constant 128 : i32
    %235 = tpu.dynamic_rotate %234 by %c128_i32_84 dim 1 : vector<8x256xf32>, i32 -> vector<8x256xf32>
    %236 = arith.mulf %234, %235 : vector<8x256xf32>
    %237 = arith.mulf %234, %221 : vector<8x256xf32>
    %c64_i32_85 = arith.constant 64 : i32
    %238 = tpu.dynamic_rotate %236 by %c64_i32_85 dim 1 : vector<8x256xf32>, i32 -> vector<8x256xf32>
    %239 = arith.addf %237, %238 : vector<8x256xf32>
    %c128_i32_86 = arith.constant 128 : i32
    %240 = tpu.dynamic_rotate %239 by %c128_i32_86 dim 1 : vector<8x256xf32>, i32 -> vector<8x256xf32>
    %241 = math.tanh %240 : vector<8x256xf32>
    %242 = arith.mulf %234, %241 : vector<8x256xf32>
    %243 = vector.extract_strided_slice %219 {offsets = [8, 0], sizes = [8, 256], strides = [1, 1]} : vector<64x256xf32> to vector<8x256xf32>
    %244 = arith.truncf %242 : vector<8x256xf32> to vector<8x256xbf16>
    %cst_87 = arith.constant dense<0.000000e+00> : vector<8x256xf32>
    %245 = tpu.matmul %244, %220, %cst_87 {dimension_numbers = #tpu.dot_dimension_numbers<[1], [0], [0], [1], [0, 0, 1, 1], [], []>} : vector<8x256xbf16>, vector<256x256xbf16>, vector<8x256xf32> -> vector<8x256xf32>
    %246 = arith.addf %243, %245 : vector<8x256xf32>
    %cst_88 = arith.constant 5.000000e-01 : f32
    %247 = vector.broadcast %cst_88 : f32 to vector<8x256xf32>
    %248 = arith.mulf %247, %246 : vector<8x256xf32>
    %249 = arith.select %16, %246, %248 : vector<8x256xi1>, vector<8x256xf32>
    %250 = math.tanh %249 : vector<8x256xf32>
    %cst_89 = arith.constant 5.000000e-01 : f32
    %251 = vector.broadcast %cst_89 : f32 to vector<8x256xf32>
    %252 = arith.mulf %251, %250 : vector<8x256xf32>
    %cst_90 = arith.constant 5.000000e-01 : f32
    %253 = vector.broadcast %cst_90 : f32 to vector<8x256xf32>
    %254 = arith.addf %252, %253 : vector<8x256xf32>
    %255 = arith.select %16, %250, %254 : vector<8x256xi1>, vector<8x256xf32>
    %c128_i32_91 = arith.constant 128 : i32
    %256 = tpu.dynamic_rotate %255 by %c128_i32_91 dim 1 : vector<8x256xf32>, i32 -> vector<8x256xf32>
    %257 = arith.mulf %255, %256 : vector<8x256xf32>
    %258 = arith.mulf %255, %239 : vector<8x256xf32>
    %c64_i32_92 = arith.constant 64 : i32
    %259 = tpu.dynamic_rotate %257 by %c64_i32_92 dim 1 : vector<8x256xf32>, i32 -> vector<8x256xf32>
    %260 = arith.addf %258, %259 : vector<8x256xf32>
    %c128_i32_93 = arith.constant 128 : i32
    %261 = tpu.dynamic_rotate %260 by %c128_i32_93 dim 1 : vector<8x256xf32>, i32 -> vector<8x256xf32>
    %262 = math.tanh %261 : vector<8x256xf32>
    %263 = arith.mulf %255, %262 : vector<8x256xf32>
    %264 = vector.extract_strided_slice %219 {offsets = [16, 0], sizes = [8, 256], strides = [1, 1]} : vector<64x256xf32> to vector<8x256xf32>
    %265 = arith.truncf %263 : vector<8x256xf32> to vector<8x256xbf16>
    %cst_94 = arith.constant dense<0.000000e+00> : vector<8x256xf32>
    %266 = tpu.matmul %265, %220, %cst_94 {dimension_numbers = #tpu.dot_dimension_numbers<[1], [0], [0], [1], [0, 0, 1, 1], [], []>} : vector<8x256xbf16>, vector<256x256xbf16>, vector<8x256xf32> -> vector<8x256xf32>
    %267 = arith.addf %264, %266 : vector<8x256xf32>
    %cst_95 = arith.constant 5.000000e-01 : f32
    %268 = vector.broadcast %cst_95 : f32 to vector<8x256xf32>
    %269 = arith.mulf %268, %267 : vector<8x256xf32>
    %270 = arith.select %16, %267, %269 : vector<8x256xi1>, vector<8x256xf32>
    %271 = math.tanh %270 : vector<8x256xf32>
    %cst_96 = arith.constant 5.000000e-01 : f32
    %272 = vector.broadcast %cst_96 : f32 to vector<8x256xf32>
    %273 = arith.mulf %272, %271 : vector<8x256xf32>
    %cst_97 = arith.constant 5.000000e-01 : f32
    %274 = vector.broadcast %cst_97 : f32 to vector<8x256xf32>
    %275 = arith.addf %273, %274 : vector<8x256xf32>
    %276 = arith.select %16, %271, %275 : vector<8x256xi1>, vector<8x256xf32>
    %c128_i32_98 = arith.constant 128 : i32
    %277 = tpu.dynamic_rotate %276 by %c128_i32_98 dim 1 : vector<8x256xf32>, i32 -> vector<8x256xf32>
    %278 = arith.mulf %276, %277 : vector<8x256xf32>
    %279 = arith.mulf %276, %260 : vector<8x256xf32>
    %c64_i32_99 = arith.constant 64 : i32
    %280 = tpu.dynamic_rotate %278 by %c64_i32_99 dim 1 : vector<8x256xf32>, i32 -> vector<8x256xf32>
    %281 = arith.addf %279, %280 : vector<8x256xf32>
    %c128_i32_100 = arith.constant 128 : i32
    %282 = tpu.dynamic_rotate %281 by %c128_i32_100 dim 1 : vector<8x256xf32>, i32 -> vector<8x256xf32>
    %283 = math.tanh %282 : vector<8x256xf32>
    %284 = arith.mulf %276, %283 : vector<8x256xf32>
    %285 = vector.extract_strided_slice %219 {offsets = [24, 0], sizes = [8, 256], strides = [1, 1]} : vector<64x256xf32> to vector<8x256xf32>
    %286 = arith.truncf %284 : vector<8x256xf32> to vector<8x256xbf16>
    %cst_101 = arith.constant dense<0.000000e+00> : vector<8x256xf32>
    %287 = tpu.matmul %286, %220, %cst_101 {dimension_numbers = #tpu.dot_dimension_numbers<[1], [0], [0], [1], [0, 0, 1, 1], [], []>} : vector<8x256xbf16>, vector<256x256xbf16>, vector<8x256xf32> -> vector<8x256xf32>
    %288 = arith.addf %285, %287 : vector<8x256xf32>
    %cst_102 = arith.constant 5.000000e-01 : f32
    %289 = vector.broadcast %cst_102 : f32 to vector<8x256xf32>
    %290 = arith.mulf %289, %288 : vector<8x256xf32>
    %291 = arith.select %16, %288, %290 : vector<8x256xi1>, vector<8x256xf32>
    %292 = math.tanh %291 : vector<8x256xf32>
    %cst_103 = arith.constant 5.000000e-01 : f32
    %293 = vector.broadcast %cst_103 : f32 to vector<8x256xf32>
    %294 = arith.mulf %293, %292 : vector<8x256xf32>
    %cst_104 = arith.constant 5.000000e-01 : f32
    %295 = vector.broadcast %cst_104 : f32 to vector<8x256xf32>
    %296 = arith.addf %294, %295 : vector<8x256xf32>
    %297 = arith.select %16, %292, %296 : vector<8x256xi1>, vector<8x256xf32>
    %c128_i32_105 = arith.constant 128 : i32
    %298 = tpu.dynamic_rotate %297 by %c128_i32_105 dim 1 : vector<8x256xf32>, i32 -> vector<8x256xf32>
    %299 = arith.mulf %297, %298 : vector<8x256xf32>
    %300 = arith.mulf %297, %281 : vector<8x256xf32>
    %c64_i32_106 = arith.constant 64 : i32
    %301 = tpu.dynamic_rotate %299 by %c64_i32_106 dim 1 : vector<8x256xf32>, i32 -> vector<8x256xf32>
    %302 = arith.addf %300, %301 : vector<8x256xf32>
    %c128_i32_107 = arith.constant 128 : i32
    %303 = tpu.dynamic_rotate %302 by %c128_i32_107 dim 1 : vector<8x256xf32>, i32 -> vector<8x256xf32>
    %304 = math.tanh %303 : vector<8x256xf32>
    %305 = arith.mulf %297, %304 : vector<8x256xf32>
    %306 = vector.extract_strided_slice %219 {offsets = [32, 0], sizes = [8, 256], strides = [1, 1]} : vector<64x256xf32> to vector<8x256xf32>
    %307 = arith.truncf %305 : vector<8x256xf32> to vector<8x256xbf16>
    %cst_108 = arith.constant dense<0.000000e+00> : vector<8x256xf32>
    %308 = tpu.matmul %307, %220, %cst_108 {dimension_numbers = #tpu.dot_dimension_numbers<[1], [0], [0], [1], [0, 0, 1, 1], [], []>} : vector<8x256xbf16>, vector<256x256xbf16>, vector<8x256xf32> -> vector<8x256xf32>
    %309 = arith.addf %306, %308 : vector<8x256xf32>
    %cst_109 = arith.constant 5.000000e-01 : f32
    %310 = vector.broadcast %cst_109 : f32 to vector<8x256xf32>
    %311 = arith.mulf %310, %309 : vector<8x256xf32>
    %312 = arith.select %16, %309, %311 : vector<8x256xi1>, vector<8x256xf32>
    %313 = math.tanh %312 : vector<8x256xf32>
    %cst_110 = arith.constant 5.000000e-01 : f32
    %314 = vector.broadcast %cst_110 : f32 to vector<8x256xf32>
    %315 = arith.mulf %314, %313 : vector<8x256xf32>
    %cst_111 = arith.constant 5.000000e-01 : f32
    %316 = vector.broadcast %cst_111 : f32 to vector<8x256xf32>
    %317 = arith.addf %315, %316 : vector<8x256xf32>
    %318 = arith.select %16, %313, %317 : vector<8x256xi1>, vector<8x256xf32>
    %c128_i32_112 = arith.constant 128 : i32
    %319 = tpu.dynamic_rotate %318 by %c128_i32_112 dim 1 : vector<8x256xf32>, i32 -> vector<8x256xf32>
    %320 = arith.mulf %318, %319 : vector<8x256xf32>
    %321 = arith.mulf %318, %302 : vector<8x256xf32>
    %c64_i32_113 = arith.constant 64 : i32
    %322 = tpu.dynamic_rotate %320 by %c64_i32_113 dim 1 : vector<8x256xf32>, i32 -> vector<8x256xf32>
    %323 = arith.addf %321, %322 : vector<8x256xf32>
    %c128_i32_114 = arith.constant 128 : i32
    %324 = tpu.dynamic_rotate %323 by %c128_i32_114 dim 1 : vector<8x256xf32>, i32 -> vector<8x256xf32>
    %325 = math.tanh %324 : vector<8x256xf32>
    %326 = arith.mulf %318, %325 : vector<8x256xf32>
    %327 = vector.extract_strided_slice %219 {offsets = [40, 0], sizes = [8, 256], strides = [1, 1]} : vector<64x256xf32> to vector<8x256xf32>
    %328 = arith.truncf %326 : vector<8x256xf32> to vector<8x256xbf16>
    %cst_115 = arith.constant dense<0.000000e+00> : vector<8x256xf32>
    %329 = tpu.matmul %328, %220, %cst_115 {dimension_numbers = #tpu.dot_dimension_numbers<[1], [0], [0], [1], [0, 0, 1, 1], [], []>} : vector<8x256xbf16>, vector<256x256xbf16>, vector<8x256xf32> -> vector<8x256xf32>
    %330 = arith.addf %327, %329 : vector<8x256xf32>
    %cst_116 = arith.constant 5.000000e-01 : f32
    %331 = vector.broadcast %cst_116 : f32 to vector<8x256xf32>
    %332 = arith.mulf %331, %330 : vector<8x256xf32>
    %333 = arith.select %16, %330, %332 : vector<8x256xi1>, vector<8x256xf32>
    %334 = math.tanh %333 : vector<8x256xf32>
    %cst_117 = arith.constant 5.000000e-01 : f32
    %335 = vector.broadcast %cst_117 : f32 to vector<8x256xf32>
    %336 = arith.mulf %335, %334 : vector<8x256xf32>
    %cst_118 = arith.constant 5.000000e-01 : f32
    %337 = vector.broadcast %cst_118 : f32 to vector<8x256xf32>
    %338 = arith.addf %336, %337 : vector<8x256xf32>
    %339 = arith.select %16, %334, %338 : vector<8x256xi1>, vector<8x256xf32>
    %c128_i32_119 = arith.constant 128 : i32
    %340 = tpu.dynamic_rotate %339 by %c128_i32_119 dim 1 : vector<8x256xf32>, i32 -> vector<8x256xf32>
    %341 = arith.mulf %339, %340 : vector<8x256xf32>
    %342 = arith.mulf %339, %323 : vector<8x256xf32>
    %c64_i32_120 = arith.constant 64 : i32
    %343 = tpu.dynamic_rotate %341 by %c64_i32_120 dim 1 : vector<8x256xf32>, i32 -> vector<8x256xf32>
    %344 = arith.addf %342, %343 : vector<8x256xf32>
    %c128_i32_121 = arith.constant 128 : i32
    %345 = tpu.dynamic_rotate %344 by %c128_i32_121 dim 1 : vector<8x256xf32>, i32 -> vector<8x256xf32>
    %346 = math.tanh %345 : vector<8x256xf32>
    %347 = arith.mulf %339, %346 : vector<8x256xf32>
    %348 = vector.extract_strided_slice %219 {offsets = [48, 0], sizes = [8, 256], strides = [1, 1]} : vector<64x256xf32> to vector<8x256xf32>
    %349 = arith.truncf %347 : vector<8x256xf32> to vector<8x256xbf16>
    %cst_122 = arith.constant dense<0.000000e+00> : vector<8x256xf32>
    %350 = tpu.matmul %349, %220, %cst_122 {dimension_numbers = #tpu.dot_dimension_numbers<[1], [0], [0], [1], [0, 0, 1, 1], [], []>} : vector<8x256xbf16>, vector<256x256xbf16>, vector<8x256xf32> -> vector<8x256xf32>
    %351 = arith.addf %348, %350 : vector<8x256xf32>
    %cst_123 = arith.constant 5.000000e-01 : f32
    %352 = vector.broadcast %cst_123 : f32 to vector<8x256xf32>
    %353 = arith.mulf %352, %351 : vector<8x256xf32>
    %354 = arith.select %16, %351, %353 : vector<8x256xi1>, vector<8x256xf32>
    %355 = math.tanh %354 : vector<8x256xf32>
    %cst_124 = arith.constant 5.000000e-01 : f32
    %356 = vector.broadcast %cst_124 : f32 to vector<8x256xf32>
    %357 = arith.mulf %356, %355 : vector<8x256xf32>
    %cst_125 = arith.constant 5.000000e-01 : f32
    %358 = vector.broadcast %cst_125 : f32 to vector<8x256xf32>
    %359 = arith.addf %357, %358 : vector<8x256xf32>
    %360 = arith.select %16, %355, %359 : vector<8x256xi1>, vector<8x256xf32>
    %c128_i32_126 = arith.constant 128 : i32
    %361 = tpu.dynamic_rotate %360 by %c128_i32_126 dim 1 : vector<8x256xf32>, i32 -> vector<8x256xf32>
    %362 = arith.mulf %360, %361 : vector<8x256xf32>
    %363 = arith.mulf %360, %344 : vector<8x256xf32>
    %c64_i32_127 = arith.constant 64 : i32
    %364 = tpu.dynamic_rotate %362 by %c64_i32_127 dim 1 : vector<8x256xf32>, i32 -> vector<8x256xf32>
    %365 = arith.addf %363, %364 : vector<8x256xf32>
    %c128_i32_128 = arith.constant 128 : i32
    %366 = tpu.dynamic_rotate %365 by %c128_i32_128 dim 1 : vector<8x256xf32>, i32 -> vector<8x256xf32>
    %367 = math.tanh %366 : vector<8x256xf32>
    %368 = arith.mulf %360, %367 : vector<8x256xf32>
    %369 = vector.extract_strided_slice %219 {offsets = [56, 0], sizes = [8, 256], strides = [1, 1]} : vector<64x256xf32> to vector<8x256xf32>
    %370 = arith.truncf %368 : vector<8x256xf32> to vector<8x256xbf16>
    %cst_129 = arith.constant dense<0.000000e+00> : vector<8x256xf32>
    %371 = tpu.matmul %370, %220, %cst_129 {dimension_numbers = #tpu.dot_dimension_numbers<[1], [0], [0], [1], [0, 0, 1, 1], [], []>} : vector<8x256xbf16>, vector<256x256xbf16>, vector<8x256xf32> -> vector<8x256xf32>
    %372 = arith.addf %369, %371 : vector<8x256xf32>
    %cst_130 = arith.constant 5.000000e-01 : f32
    %373 = vector.broadcast %cst_130 : f32 to vector<8x256xf32>
    %374 = arith.mulf %373, %372 : vector<8x256xf32>
    %375 = arith.select %16, %372, %374 : vector<8x256xi1>, vector<8x256xf32>
    %376 = math.tanh %375 : vector<8x256xf32>
    %cst_131 = arith.constant 5.000000e-01 : f32
    %377 = vector.broadcast %cst_131 : f32 to vector<8x256xf32>
    %378 = arith.mulf %377, %376 : vector<8x256xf32>
    %cst_132 = arith.constant 5.000000e-01 : f32
    %379 = vector.broadcast %cst_132 : f32 to vector<8x256xf32>
    %380 = arith.addf %378, %379 : vector<8x256xf32>
    %381 = arith.select %16, %376, %380 : vector<8x256xi1>, vector<8x256xf32>
    %c128_i32_133 = arith.constant 128 : i32
    %382 = tpu.dynamic_rotate %381 by %c128_i32_133 dim 1 : vector<8x256xf32>, i32 -> vector<8x256xf32>
    %383 = arith.mulf %381, %382 : vector<8x256xf32>
    %384 = arith.mulf %381, %365 : vector<8x256xf32>
    %c64_i32_134 = arith.constant 64 : i32
    %385 = tpu.dynamic_rotate %383 by %c64_i32_134 dim 1 : vector<8x256xf32>, i32 -> vector<8x256xf32>
    %386 = arith.addf %384, %385 : vector<8x256xf32>
    %c128_i32_135 = arith.constant 128 : i32
    %387 = tpu.dynamic_rotate %386 by %c128_i32_135 dim 1 : vector<8x256xf32>, i32 -> vector<8x256xf32>
    %388 = math.tanh %387 : vector<8x256xf32>
    %389 = arith.mulf %381, %388 : vector<8x256xf32>
    %390 = tpu.concatenate %242, %263, %284, %305, %326, %347, %368, %389 in 0 : vector<8x256xf32>, vector<8x256xf32>, vector<8x256xf32>, vector<8x256xf32>, vector<8x256xf32>, vector<8x256xf32>, vector<8x256xf32>, vector<8x256xf32> -> vector<64x256xf32>
    %391 = arith.truncf %390 : vector<64x256xf32> to vector<64x256xbf16>
    %c0_136 = arith.constant 0 : index
    %c0_137 = arith.constant 0 : index
    %392 = vector.load %arg7[%c0_136, %c0_137] : memref<256x128xbf16, #tpu.memory_space<vmem>>, vector<256x128xbf16>
    %cst_138 = arith.constant dense<0.000000e+00> : vector<64x128xf32>
    %393 = tpu.matmul %391, %392, %cst_138 {dimension_numbers = #tpu.dot_dimension_numbers<[1], [0], [0], [1], [0, 0, 1, 1], [], []>} : vector<64x256xbf16>, vector<256x128xbf16>, vector<64x128xf32> -> vector<64x128xf32>
    %394 = vector.broadcast %4 : vector<1x128xf32> to vector<64x128xf32>
    %395 = arith.addf %393, %394 : vector<64x128xf32>
    %c0_139 = arith.constant 0 : index
    %c0_140 = arith.constant 0 : index
    %396 = vector.load %arg9[%c0_139, %c0_140] : memref<64x128xf32, #tpu.memory_space<vmem>>, vector<64x128xf32>
    tpu.vector_store %arg9[%c0_139, %c0_140], %395 {strides = array<i32>} : memref<64x128xf32, #tpu.memory_space<vmem>>, vector<64x128xf32>,
    return
  }
}

</mosaic_0001>

<llo_original>
// kernel: lstm_lm_bowman_forward.1
$region0: #{lstm_lm_bowman_forward.1}
  #allocation0 [shape = 'u32[]', space=smem, size = 0x4, offset = 0x4, fixed_abs, tag = 'smem constant byte address 0x4 - core index']
  #allocation1 [shape = 'u32[72,128]{1,0:T(1,128)}', space=vmem, size = 0x9000, scoped, tag = 'internal scratch']
  %s0 = inlined_call_operand.vmem [shape: bf16[64,32], index: 0, kind: input, shape index: {}]
  %s1 = inlined_call_operand.vmem [shape: bf16[64,32], index: 1, kind: input, shape index: {}]
  %s2 = inlined_call_operand.vmem [shape: bf16[32,256], index: 2, kind: input, shape index: {}]
  %s3 = inlined_call_operand.vmem [shape: bf16[128,128], index: 3, kind: input, shape index: {}]
  %s4 = inlined_call_operand.hbm [shape: bf16[256,256], index: 4, kind: input, shape index: {}]
  %s5 = inlined_call_operand.vmem [shape: bf16[32,256], index: 5, kind: input, shape index: {}]
  %s6 = inlined_call_operand.hbm [shape: bf16[256,256], index: 6, kind: input, shape index: {}]
  %s7 = inlined_call_operand.vmem [shape: bf16[256,128], index: 7, kind: input, shape index: {}]
  %s8 = inlined_call_operand.vmem [shape: f32[4,256], index: 8, kind: input, shape index: {}]
  %s9 = inlined_call_operand.vmem [shape: f32[64,128], index: 9, kind: output, shape index: {}]
  %s10 = sld [smem:[#allocation0]]
  $region54: #{lstm_lm_bowman_forward.1} parent=0
    _
  %s12 = ssub.s32 1, %s10
  %s13 = scalar_select 0, %s12, %s10
  $region1: #{lstm_lm_bowman_forward.1} parent=0
    #allocation2 [shape = 'u8[131072]{0}', space=vmem, size = 0x20000, scoped, tag = 'input window, operand 4, single buffered']
    #allocation3 [shape = 's32[1]{0}', space=sflag, size = 0x4, scoped, tag = 'scoped memory for lstm_lm_bowman_forward.1']
    #allocation4 [shape = 'u8[131072]{0}', space=vmem, size = 0x20000, scoped, tag = 'input window, operand 6, single buffered']
    #allocation5 [shape = 's32[1]{0}', space=sflag, size = 0x4, scoped, tag = 'scoped memory for lstm_lm_bowman_forward.1']
    %14 = vsyncpa [#allocation3], 0
    %15 = vsyncpa [#allocation5], 0
    // Predicated region
    $region2: #{lstm_lm_bowman_forward.1} parent=1 // pred_check
      _
    $region3: #{lstm_lm_bowman_forward.1} parent=1 // pred_check_branch
      %17 = sbr.rel (0) target = $region5
    $region4: #{lstm_lm_bowman_forward.1} parent=1 // pred_region
      _
    $region5: #{lstm_lm_bowman_forward.1} parent=1 // pred_fallthru
      _
    // Predicated region
    $region6: #{lstm_lm_bowman_forward.1} parent=1 // pred_check
      _
    $region7: #{lstm_lm_bowman_forward.1} parent=1 // pred_check_branch
      %19 = sbr.rel (0) target = $region9
    $region8: #{lstm_lm_bowman_forward.1} parent=1 // pred_region
      _
    $region9: #{lstm_lm_bowman_forward.1} parent=1 // pred_fallthru
      _
    // Predicated region
    $region10: #{lstm_lm_bowman_forward.1} parent=1 // pred_check
      _
    $region11: #{lstm_lm_bowman_forward.1} parent=1 // pred_check_branch
      %21 = sbr.rel (0) target = $region13
    $region12: #{lstm_lm_bowman_forward.1} parent=1 // pred_region
      _
    $region13: #{lstm_lm_bowman_forward.1} parent=1 // pred_fallthru
      _
    // Predicated region
    $region14: #{lstm_lm_bowman_forward.1} parent=1 // pred_check
      _
    $region15: #{lstm_lm_bowman_forward.1} parent=1 // pred_check_branch
      %23 = sbr.rel (0) target = $region17
    $region16: #{lstm_lm_bowman_forward.1} parent=1 // pred_region
      _
    $region17: #{lstm_lm_bowman_forward.1} parent=1 // pred_fallthru
      _
    // Predicated region
    $region18: #{lstm_lm_bowman_forward.1} parent=1 // pred_check
      _
    $region19: #{lstm_lm_bowman_forward.1} parent=1 // pred_check_branch
      %25 = sbr.rel (0) target = $region21
    $region20: #{lstm_lm_bowman_forward.1} parent=1 // pred_region
      %27 = vsyncadd [#allocation3], 0
      %s28 = sshll.u32 %s4, 4
      %s29 = int_to_ptr.hbm [resolvable:$true] %s28
      %s30 = sshll.u32 [#allocation2], 4
      %s31 = int_to_ptr.vmem [resolvable:$true] %s30
      %36 = dma.hbm_to_vmem [thread:$0]  %s29, 4096, %s31, [#allocation3], 128, 128, 8
    $region21: #{lstm_lm_bowman_forward.1} parent=1 // pred_fallthru
      _
    // Predicated region
    $region22: #{lstm_lm_bowman_forward.1} parent=1 // pred_check
      _
    $region23: #{lstm_lm_bowman_forward.1} parent=1 // pred_check_branch
      %38 = sbr.rel (0) target = $region25
    $region24: #{lstm_lm_bowman_forward.1} parent=1 // pred_region
      _
    $region25: #{lstm_lm_bowman_forward.1} parent=1 // pred_fallthru
      _
    // Predicated region
    $region26: #{lstm_lm_bowman_forward.1} parent=1 // pred_check
      _
    $region27: #{lstm_lm_bowman_forward.1} parent=1 // pred_check_branch
      %40 = sbr.rel (0) target = $region29
    $region28: #{lstm_lm_bowman_forward.1} parent=1 // pred_region
      %42 = vsyncadd [#allocation5], 0
      %s43 = sshll.u32 %s6, 4
      %s44 = int_to_ptr.hbm [resolvable:$true] %s43
      %s45 = sshll.u32 [#allocation4], 4
      %s46 = int_to_ptr.vmem [resolvable:$true] %s45
      %51 = dma.hbm_to_vmem [thread:$0]  %s44, 4096, %s46, [#allocation5], 128, 128, 8
    $region29: #{lstm_lm_bowman_forward.1} parent=1 // pred_fallthru
      _
    // Predicated region
    $region30: #{lstm_lm_bowman_forward.1} parent=1 // pred_check
      _
    $region31: #{lstm_lm_bowman_forward.1} parent=1 // pred_check_branch
      %53 = sbr.rel (0) target = $region33
    $region32: #{lstm_lm_bowman_forward.1} parent=1 // pred_region
      _
    $region33: #{lstm_lm_bowman_forward.1} parent=1 // pred_fallthru
      _
    // Predicated region
    $region34: #{lstm_lm_bowman_forward.1} parent=1 // pred_check
      _
    $region35: #{lstm_lm_bowman_forward.1} parent=1 // pred_check_branch
      %55 = sbr.rel (0) target = $region37
    $region36: #{lstm_lm_bowman_forward.1} parent=1 // pred_region
      _
    $region37: #{lstm_lm_bowman_forward.1} parent=1 // pred_fallthru
      _
    // Predicated region
    $region38: #{lstm_lm_bowman_forward.1} parent=1 // pred_check
      _
    $region39: #{lstm_lm_bowman_forward.1} parent=1 // pred_check_branch
      %57 = sbr.rel (0) target = $region41
    $region40: #{lstm_lm_bowman_forward.1} parent=1 // pred_region
      %59 = dma.done [#allocation3], 4096
    $region41: #{lstm_lm_bowman_forward.1} parent=1 // pred_fallthru
      _
    // Predicated region
    $region42: #{lstm_lm_bowman_forward.1} parent=1 // pred_check
      _
    $region43: #{lstm_lm_bowman_forward.1} parent=1 // pred_check_branch
      %61 = sbr.rel (0) target = $region45
    $region44: #{lstm_lm_bowman_forward.1} parent=1 // pred_region
      %63 = dma.done [#allocation5], 4096
    $region45: #{lstm_lm_bowman_forward.1} parent=1 // pred_fallthru
      _
    %v65 = vld [vmem:[%s8] sm:$0xff]
    %v66 = vlaneseq
    %v67 = vand.u32 %v66, 127
    %vm68 = vcmp.ge.s32.totalorder %v67, 64
    %vm69 = vcmp.lt.s32.totalorder %v67, 96
    %vm70 = vmand %vm68, %vm69
    %v71 = vadd.s32 %v67, 128
    %vm72 = vcmp.ge.s32.totalorder %v67, 128
    %vm73 = vcmp.ge.s32.totalorder %v71, 128
    %vm74 = vcmp.lt.s32.totalorder %v67, 192
    %vm75 = vcmp.lt.s32.totalorder %v71, 192
    %vm76 = vmand %vm72, %vm74
    %vm77 = vmand %vm73, %vm75
    %v78 = vld [vmem:[%s0] sm:$0xf]
    %v79 = vld [vmem:[%s0 + $0x4] sm:$0xf]
    %v80 = vld [vmem:[%s0 + $0x8] sm:$0xf]
    %v81 = vld [vmem:[%s0 + $0xc] sm:$0xf]
    %v82 = vld [vmem:[%s0 + $0x10] sm:$0xf]
    %v83 = vld [vmem:[%s0 + $0x14] sm:$0xf]
    %v84 = vld [vmem:[%s0 + $0x18] sm:$0xf]
    %v85 = vld [vmem:[%s0 + $0x1c] sm:$0xf]
    %v86 = vld [vmem:[%s2] sm:$0xff]
    %v87 = vld [vmem:[%s2 + $0x8] sm:$0xff]
    %v88 = vld [vmem:[%s2 + $0x10] sm:$0xff]
    %v89 = vld [vmem:[%s2 + $0x18] sm:$0xff]
    %v91 = vperm.slane %v65, 0
    %v92 = vperm.slane %v65, 4
    %v95 = vperm.slane %v91, 0
    %v96 = vperm.slane %v92, 0
    %v105 = vunpack.c.l.b16 %v78
    %v106 = vunpack.c.l.b16 %v79
    %v107 = vunpack.c.l.b16 %v80
    %v108 = vunpack.c.l.b16 %v81
    %v109 = vunpack.c.l.b16 %v82
    %v110 = vunpack.c.l.b16 %v83
    %v111 = vunpack.c.l.b16 %v84
    %v112 = vunpack.c.l.b16 %v85
    %v113 = vpack.c.b16 %v106, %v105
    %v114 = vpack.c.b16 %v108, %v107
    %v115 = vpack.c.b16 %v110, %v109
    %v116 = vpack.c.b16 %v112, %v111
    %v121 = vunpack.c.l.b16 %v86
    %v122 = vunpack.c.h.b16 %v86
    %v123 = vunpack.c.l.b16 %v87
    %v124 = vunpack.c.h.b16 %v87
    %v125 = vunpack.c.l.b16 %v88
    %v126 = vunpack.c.h.b16 %v88
    %v127 = vunpack.c.l.b16 %v89
    %v128 = vunpack.c.h.b16 %v89
    %v129 = vpack.c.b16 %v123, %v121
    %v130 = vpack.c.b16 %v124, %v122
    %v131 = vpack.c.b16 %v127, %v125
    %v132 = vpack.c.b16 %v128, %v126
    %vm137 = vcmask 261120
    %v139 = vsel %vm137, %v113, 0
    %v142 = vsel %vm137, %v114, 0
    %v145 = vsel %vm137, %v115, 0
    %v148 = vsel %vm137, %v116, 0
    %150 = vmatpush.bf16.msra.mxu0 0
    %151 = vmatpush.bf16.msra.mxu0 0
    %152 = vmatpush.bf16.msra.mxu0 0
    %153 = vmatpush.bf16.msra.mxu0 0
    %154 = vmatpush.bf16.msra.mxu0 0
    %155 = vmatpush.bf16.msra.mxu0 0
    %156 = vmatpush.bf16.msra.mxu0 %v131
    %157 = vmatpush.bf16.msra.mxu0 %v129
    %158 = vmatmul.bf16.gmra.mxu0 %v139
    %v159 = vpop.f32.mrf.mxu0
    %v160 = vadd.f32 %v95, %v159
    %v161 = vpop.f32.mrf.mxu0
    %v162 = vadd.f32 %v95, %v161
    %163 = vmatmul.bf16.gmra.mxu0 %v142
    %v164 = vpop.f32.mrf.mxu0
    %v165 = vadd.f32 %v95, %v164
    %v166 = vpop.f32.mrf.mxu0
    %v167 = vadd.f32 %v95, %v166
    %168 = vmatmul.bf16.gmra.mxu0 %v145
    %v169 = vpop.f32.mrf.mxu0
    %v170 = vadd.f32 %v95, %v169
    %v171 = vpop.f32.mrf.mxu0
    %v172 = vadd.f32 %v95, %v171
    %173 = vmatmul.bf16.gmra.mxu0 %v148
    %v174 = vpop.f32.mrf.mxu0
    %v175 = vadd.f32 %v95, %v174
    %v176 = vpop.f32.mrf.mxu0
    %v177 = vadd.f32 %v95, %v176
    %178 = vdwg.mxu0
    %179 = vmatpush.bf16.msra.mxu0 0
    %180 = vmatpush.bf16.msra.mxu0 0
    %181 = vmatpush.bf16.msra.mxu0 0
    %182 = vmatpush.bf16.msra.mxu0 0
    %183 = vmatpush.bf16.msra.mxu0 0
    %184 = vmatpush.bf16.msra.mxu0 0
    %185 = vmatpush.bf16.msra.mxu0 %v132
    %186 = vmatpush.bf16.msra.mxu0 %v130
    %187 = vmatmul.bf16.gmra.mxu0 %v139
    %v188 = vpop.f32.mrf.mxu0
    %v189 = vpop.f32.mrf.mxu0
    %190 = vmatmul.bf16.gmra.mxu0 %v142
    %v191 = vpop.f32.mrf.mxu0
    %v192 = vpop.f32.mrf.mxu0
    %193 = vmatmul.bf16.gmra.mxu0 %v145
    %v194 = vpop.f32.mrf.mxu0
    %v195 = vpop.f32.mrf.mxu0
    %196 = vmatmul.bf16.gmra.mxu0 %v148
    %v197 = vpop.f32.mrf.mxu0
    %v198 = vpop.f32.mrf.mxu0
    %v199 = vadd.f32 %v96, %v198
    %200 = vdwg.mxu0
    %v201 = vld [vmem:[%s3] sm:$0xf]
    %v202 = vld [vmem:[%s3 + $0x4] sm:$0xf]
    %v203 = vld [vmem:[%s3 + $0x8] sm:$0xf]
    %v204 = vld [vmem:[%s3 + $0xc] sm:$0xf]
    %v205 = vld [vmem:[%s3 + $0x10] sm:$0xf]
    %v206 = vld [vmem:[%s3 + $0x14] sm:$0xf]
    %v207 = vld [vmem:[%s3 + $0x18] sm:$0xf]
    %v208 = vld [vmem:[%s3 + $0x1c] sm:$0xf]
    %v209 = vld [vmem:[%s3 + $0x20] sm:$0xf]
    %v210 = vld [vmem:[%s3 + $0x24] sm:$0xf]
    %v211 = vld [vmem:[%s3 + $0x28] sm:$0xf]
    %v212 = vld [vmem:[%s3 + $0x2c] sm:$0xf]
    %v213 = vld [vmem:[%s3 + $0x30] sm:$0xf]
    %v214 = vld [vmem:[%s3 + $0x34] sm:$0xf]
    %v215 = vld [vmem:[%s3 + $0x38] sm:$0xf]
    %v216 = vld [vmem:[%s3 + $0x3c] sm:$0xf]
    %v217 = vmul.f32 %v160, 0.5
    %v218 = vsel %vm70, %v160, %v217
    %v219 = vtanh.pop %v218
    %v220 = vmul.f32 %v219, 0.5
    %v221 = vadd.f32 %v220, 0.5
    %v222 = vsel %vm70, %v219, %v221
    %223 = vrot.lane.b32.xlu0 %v222, 64
    %v224 = vpop.permute.xlu0 %223
    %v225 = vmul.f32 %v222, %v224
    %v226 = vmul.f32 %v222, 0.0
    %227 = vrot.lane.b32.xlu0 %v225, 32
    %v228 = vpop.permute.xlu0 %227
    %v229 = vadd.f32 %v226, %v228
    %230 = vrot.lane.b32.xlu0 %v229, 64
    %v231 = vpop.permute.xlu0 %230
    %v232 = vtanh.pop %v231
    %v233 = vmul.f32 %v222, %v232
    %v234 = vpack.c.bf16 %v233, %v233
    %v251 = vunpack.c.l.b16 %v201
    %v252 = vunpack.c.l.b16 %v202
    %v253 = vunpack.c.l.b16 %v203
    %v254 = vunpack.c.l.b16 %v204
    %v255 = vunpack.c.l.b16 %v205
    %v256 = vunpack.c.l.b16 %v206
    %v257 = vunpack.c.l.b16 %v207
    %v258 = vunpack.c.l.b16 %v208
    %v259 = vunpack.c.l.b16 %v209
    %v260 = vunpack.c.l.b16 %v210
    %v261 = vunpack.c.l.b16 %v211
    %v262 = vunpack.c.l.b16 %v212
    %v263 = vunpack.c.l.b16 %v213
    %v264 = vunpack.c.l.b16 %v214
    %v265 = vunpack.c.l.b16 %v215
    %v266 = vunpack.c.l.b16 %v216
    %v267 = vpack.c.b16 %v252, %v251
    %v268 = vpack.c.b16 %v254, %v253
    %v269 = vpack.c.b16 %v256, %v255
    %v270 = vpack.c.b16 %v258, %v257
    %v271 = vpack.c.b16 %v260, %v259
    %v272 = vpack.c.b16 %v262, %v261
    %v273 = vpack.c.b16 %v264, %v263
    %v274 = vpack.c.b16 %v266, %v265
    %283 = vmatpush.bf16.msra.mxu0 %v274
    %284 = vmatpush.bf16.msra.mxu0 %v273
    %285 = vmatpush.bf16.msra.mxu0 %v272
    %286 = vmatpush.bf16.msra.mxu0 %v271
    %287 = vmatpush.bf16.msra.mxu0 %v270
    %288 = vmatpush.bf16.msra.mxu0 %v269
    %289 = vmatpush.bf16.msra.mxu0 %v268
    %290 = vmatpush.bf16.msra.mxu0 %v267
    %291 = vmatmul.bf16.gmra.mxu0 %v234
    %v292 = vpop.f32.mrf.mxu0
    %v293 = vadd.f32 0.0, %v292
    %v294 = vpop.f32.mrf.mxu0
    %295 = vdwg.mxu0
    %v296 = vadd.f32 %v162, %v293
    %v297 = vmul.f32 %v296, 0.5
    %v298 = vsel %vm70, %v296, %v297
    %v299 = vtanh.pop %v298
    %v300 = vmul.f32 %v299, 0.5
    %v301 = vadd.f32 %v300, 0.5
    %v302 = vsel %vm70, %v299, %v301
    %303 = vrot.lane.b32.xlu0 %v302, 64
    %v304 = vpop.permute.xlu0 %303
    %v305 = vmul.f32 %v302, %v304
    %v306 = vmul.f32 %v302, %v229
    %307 = vrot.lane.b32.xlu0 %v305, 32
    %v308 = vpop.permute.xlu0 %307
    %v309 = vadd.f32 %v306, %v308
    %310 = vrot.lane.b32.xlu0 %v309, 64
    %v311 = vpop.permute.xlu0 %310
    %v312 = vtanh.pop %v311
    %v313 = vmul.f32 %v302, %v312
    %v314 = vpack.c.bf16 %v313, %v313
    %315 = vmatpush.bf16.msra.mxu0 %v274
    %316 = vmatpush.bf16.msra.mxu0 %v273
    %317 = vmatpush.bf16.msra.mxu0 %v272
    %318 = vmatpush.bf16.msra.mxu0 %v271
    %319 = vmatpush.bf16.msra.mxu0 %v270
    %320 = vmatpush.bf16.msra.mxu0 %v269
    %321 = vmatpush.bf16.msra.mxu0 %v268
    %322 = vmatpush.bf16.msra.mxu0 %v267
    %323 = vmatmul.bf16.gmra.mxu0 %v314
    %v324 = vpop.f32.mrf.mxu0
    %v325 = vadd.f32 0.0, %v324
    %v326 = vpop.f32.mrf.mxu0
    %327 = vdwg.mxu0
    %v328 = vadd.f32 %v165, %v325
    %v329 = vmul.f32 %v328, 0.5
    %v330 = vsel %vm70, %v328, %v329
    %v331 = vtanh.pop %v330
    %v332 = vmul.f32 %v331, 0.5
    %v333 = vadd.f32 %v332, 0.5
    %v334 = vsel %vm70, %v331, %v333
    %335 = vrot.lane.b32.xlu0 %v334, 64
    %v336 = vpop.permute.xlu0 %335
    %v337 = vmul.f32 %v334, %v336
    %v338 = vmul.f32 %v334, %v309
    %339 = vrot.lane.b32.xlu0 %v337, 32
    %v340 = vpop.permute.xlu0 %339
    %v341 = vadd.f32 %v338, %v340
    %342 = vrot.lane.b32.xlu0 %v341, 64
    %v343 = vpop.permute.xlu0 %342
    %v344 = vtanh.pop %v343
    %v345 = vmul.f32 %v334, %v344
    %v346 = vpack.c.bf16 %v345, %v345
    %347 = vmatpush.bf16.msra.mxu0 %v274
    %348 = vmatpush.bf16.msra.mxu0 %v273
    %349 = vmatpush.bf16.msra.mxu0 %v272
    %350 = vmatpush.bf16.msra.mxu0 %v271
    %351 = vmatpush.bf16.msra.mxu0 %v270
    %352 = vmatpush.bf16.msra.mxu0 %v269
    %353 = vmatpush.bf16.msra.mxu0 %v268
    %354 = vmatpush.bf16.msra.mxu0 %v267
    %355 = vmatmul.bf16.gmra.mxu0 %v346
    %v356 = vpop.f32.mrf.mxu0
    %v357 = vadd.f32 0.0, %v356
    %v358 = vpop.f32.mrf.mxu0
    %359 = vdwg.mxu0
    %v360 = vadd.f32 %v167, %v357
    %v361 = vmul.f32 %v360, 0.5
    %v362 = vsel %vm70, %v360, %v361
    %v363 = vtanh.pop %v362
    %v364 = vmul.f32 %v363, 0.5
    %v365 = vadd.f32 %v364, 0.5
    %v366 = vsel %vm70, %v363, %v365
    %367 = vrot.lane.b32.xlu0 %v366, 64
    %v368 = vpop.permute.xlu0 %367
    %v369 = vmul.f32 %v366, %v368
    %v370 = vmul.f32 %v366, %v341
    %371 = vrot.lane.b32.xlu0 %v369, 32
    %v372 = vpop.permute.xlu0 %371
    %v373 = vadd.f32 %v370, %v372
    %374 = vrot.lane.b32.xlu0 %v373, 64
    %v375 = vpop.permute.xlu0 %374
    %v376 = vtanh.pop %v375
    %v377 = vmul.f32 %v366, %v376
    %v378 = vpack.c.bf16 %v377, %v377
    %379 = vmatpush.bf16.msra.mxu0 %v274
    %380 = vmatpush.bf16.msra.mxu0 %v273
    %381 = vmatpush.bf16.msra.mxu0 %v272
    %382 = vmatpush.bf16.msra.mxu0 %v271
    %383 = vmatpush.bf16.msra.mxu0 %v270
    %384 = vmatpush.bf16.msra.mxu0 %v269
    %385 = vmatpush.bf16.msra.mxu0 %v268
    %386 = vmatpush.bf16.msra.mxu0 %v267
    %387 = vmatmul.bf16.gmra.mxu0 %v378
    %v388 = vpop.f32.mrf.mxu0
    %v389 = vadd.f32 0.0, %v388
    %v390 = vpop.f32.mrf.mxu0
    %391 = vdwg.mxu0
    %v392 = vadd.f32 %v170, %v389
    %v393 = vmul.f32 %v392, 0.5
    %v394 = vsel %vm70, %v392, %v393
    %v395 = vtanh.pop %v394
    %v396 = vmul.f32 %v395, 0.5
    %v397 = vadd.f32 %v396, 0.5
    %v398 = vsel %vm70, %v395, %v397
    %399 = vrot.lane.b32.xlu0 %v398, 64
    %v400 = vpop.permute.xlu0 %399
    %v401 = vmul.f32 %v398, %v400
    %v402 = vmul.f32 %v398, %v373
    %403 = vrot.lane.b32.xlu0 %v401, 32
    %v404 = vpop.permute.xlu0 %403
    %v405 = vadd.f32 %v402, %v404
    %406 = vrot.lane.b32.xlu0 %v405, 64
    %v407 = vpop.permute.xlu0 %406
    %v408 = vtanh.pop %v407
    %v409 = vmul.f32 %v398, %v408
    %v410 = vpack.c.bf16 %v409, %v409
    %411 = vmatpush.bf16.msra.mxu0 %v274
    %412 = vmatpush.bf16.msra.mxu0 %v273
    %413 = vmatpush.bf16.msra.mxu0 %v272
    %414 = vmatpush.bf16.msra.mxu0 %v271
    %415 = vmatpush.bf16.msra.mxu0 %v270
    %416 = vmatpush.bf16.msra.mxu0 %v269
    %417 = vmatpush.bf16.msra.mxu0 %v268
    %418 = vmatpush.bf16.msra.mxu0 %v267
    %419 = vmatmul.bf16.gmra.mxu0 %v410
    %v420 = vpop.f32.mrf.mxu0
    %v421 = vadd.f32 0.0, %v420
    %v422 = vpop.f32.mrf.mxu0
    %423 = vdwg.mxu0
    %v424 = vadd.f32 %v172, %v421
    %v425 = vmul.f32 %v424, 0.5
    %v426 = vsel %vm70, %v424, %v425
    %v427 = vtanh.pop %v426
    %v428 = vmul.f32 %v427, 0.5
    %v429 = vadd.f32 %v428, 0.5
    %v430 = vsel %vm70, %v427, %v429
    %431 = vrot.lane.b32.xlu0 %v430, 64
    %v432 = vpop.permute.xlu0 %431
    %v433 = vmul.f32 %v430, %v432
    %v434 = vmul.f32 %v430, %v405
    %435 = vrot.lane.b32.xlu0 %v433, 32
    %v436 = vpop.permute.xlu0 %435
    %v437 = vadd.f32 %v434, %v436
    %438 = vrot.lane.b32.xlu0 %v437, 64
    %v439 = vpop.permute.xlu0 %438
    %v440 = vtanh.pop %v439
    %v441 = vmul.f32 %v430, %v440
    %v442 = vpack.c.bf16 %v441, %v441
    %443 = vmatpush.bf16.msra.mxu0 %v274
    %444 = vmatpush.bf16.msra.mxu0 %v273
    %445 = vmatpush.bf16.msra.mxu0 %v272
    %446 = vmatpush.bf16.msra.mxu0 %v271
    %447 = vmatpush.bf16.msra.mxu0 %v270
    %448 = vmatpush.bf16.msra.mxu0 %v269
    %449 = vmatpush.bf16.msra.mxu0 %v268
    %450 = vmatpush.bf16.msra.mxu0 %v267
    %451 = vmatmul.bf16.gmra.mxu0 %v442
    %v452 = vpop.f32.mrf.mxu0
    %v453 = vadd.f32 0.0, %v452
    %v454 = vpop.f32.mrf.mxu0
    %455 = vdwg.mxu0
    %v456 = vadd.f32 %v175, %v453
    %v457 = vmul.f32 %v456, 0.5
    %v458 = vsel %vm70, %v456, %v457
    %v459 = vtanh.pop %v458
    %v460 = vmul.f32 %v459, 0.5
    %v461 = vadd.f32 %v460, 0.5
    %v462 = vsel %vm70, %v459, %v461
    %463 = vrot.lane.b32.xlu0 %v462, 64
    %v464 = vpop.permute.xlu0 %463
    %v465 = vmul.f32 %v462, %v464
    %v466 = vmul.f32 %v462, %v437
    %467 = vrot.lane.b32.xlu0 %v465, 32
    %v468 = vpop.permute.xlu0 %467
    %v469 = vadd.f32 %v466, %v468
    %470 = vrot.lane.b32.xlu0 %v469, 64
    %v471 = vpop.permute.xlu0 %470
    %v472 = vtanh.pop %v471
    %v473 = vmul.f32 %v462, %v472
    %v474 = vpack.c.bf16 %v473, %v473
    %475 = vmatpush.bf16.msra.mxu0 %v274
    %476 = vmatpush.bf16.msra.mxu0 %v273
    %477 = vmatpush.bf16.msra.mxu0 %v272
    %478 = vmatpush.bf16.msra.mxu0 %v271
    %479 = vmatpush.bf16.msra.mxu0 %v270
    %480 = vmatpush.bf16.msra.mxu0 %v269
    %481 = vmatpush.bf16.msra.mxu0 %v268
    %482 = vmatpush.bf16.msra.mxu0 %v267
    %483 = vmatmul.bf16.gmra.mxu0 %v474
    %v484 = vpop.f32.mrf.mxu0
    %v485 = vadd.f32 0.0, %v484
    %v486 = vpop.f32.mrf.mxu0
    %487 = vdwg.mxu0
    %v488 = vadd.f32 %v177, %v485
    %v489 = vmul.f32 %v488, 0.5
    %v490 = vsel %vm70, %v488, %v489
    %v491 = vtanh.pop %v490
    %v492 = vmul.f32 %v491, 0.5
    %v493 = vadd.f32 %v492, 0.5
    %v494 = vsel %vm70, %v491, %v493
    %495 = vrot.lane.b32.xlu0 %v494, 64
    %v496 = vpop.permute.xlu0 %495
    %v497 = vmul.f32 %v494, %v496
    %v498 = vmul.f32 %v494, %v469
    %499 = vrot.lane.b32.xlu0 %v497, 32
    %v500 = vpop.permute.xlu0 %499
    %v501 = vadd.f32 %v498, %v500
    %502 = vrot.lane.b32.xlu0 %v501, 64
    %v503 = vpop.permute.xlu0 %502
    %v504 = vtanh.pop %v503
    %v505 = vmul.f32 %v494, %v504
    %v506 = vmul.f32 %v199, 0.5
    %v507 = vsel %vm70, %v199, %v506
    %v508 = vtanh.pop %v507
    %v509 = vmul.f32 %v508, 0.5
    %v510 = vadd.f32 %v509, 0.5
    %v511 = vsel %vm70, %v508, %v510
    %512 = vrot.lane.b32.xlu0 %v511, 64
    %v513 = vpop.permute.xlu0 %512
    %v514 = vmul.f32 %v511, %v513
    %v515 = vmul.f32 %v511, 0.0
    %516 = vrot.lane.b32.xlu0 %v514, 32
    %v517 = vpop.permute.xlu0 %516
    %v518 = vadd.f32 %v515, %v517
    %519 = vrot.lane.b32.xlu0 %v518, 64
    %v520 = vpop.permute.xlu0 %519
    %v521 = vtanh.pop %v520
    %v522 = vmul.f32 %v511, %v521
    %v523 = vpack.c.bf16 %v505, %v505
    %v524 = vpack.c.bf16 %v522, %v522
    %v525 = vld [vmem:[#allocation2] sm:$0xff]
    %v526 = vld [vmem:[#allocation2 + $0x8] sm:$0xff]
    %v527 = vld [vmem:[#allocation2 + $0x10] sm:$0xff]
    %v528 = vld [vmem:[#allocation2 + $0x18] sm:$0xff]
    %v529 = vld [vmem:[#allocation2 + $0x20] sm:$0xff]
    %v530 = vld [vmem:[#allocation2 + $0x28] sm:$0xff]
    %v531 = vld [vmem:[#allocation2 + $0x30] sm:$0xff]
    %v532 = vld [vmem:[#allocation2 + $0x38] sm:$0xff]
    %v533 = vld [vmem:[#allocation2 + $0x40] sm:$0xff]
    %v534 = vld [vmem:[#allocation2 + $0x48] sm:$0xff]
    %v535 = vld [vmem:[#allocation2 + $0x50] sm:$0xff]
    %v536 = vld [vmem:[#allocation2 + $0x58] sm:$0xff]
    %v537 = vld [vmem:[#allocation2 + $0x60] sm:$0xff]
    %v538 = vld [vmem:[#allocation2 + $0x68] sm:$0xff]
    %v539 = vld [vmem:[#allocation2 + $0x70] sm:$0xff]
    %v540 = vld [vmem:[#allocation2 + $0x78] sm:$0xff]
    %v541 = vld [vmem:[#allocation2 + $0x80] sm:$0xff]
    %v542 = vld [vmem:[#allocation2 + $0x88] sm:$0xff]
    %v543 = vld [vmem:[#allocation2 + $0x90] sm:$0xff]
    %v544 = vld [vmem:[#allocation2 + $0x98] sm:$0xff]
    %v545 = vld [vmem:[#allocation2 + $0xa0] sm:$0xff]
    %v546 = vld [vmem:[#allocation2 + $0xa8] sm:$0xff]
    %v547 = vld [vmem:[#allocation2 + $0xb0] sm:$0xff]
    %v548 = vld [vmem:[#allocation2 + $0xb8] sm:$0xff]
    %v549 = vld [vmem:[#allocation2 + $0xc0] sm:$0xff]
    %v550 = vld [vmem:[#allocation2 + $0xc8] sm:$0xff]
    %v551 = vld [vmem:[#allocation2 + $0xd0] sm:$0xff]
    %v552 = vld [vmem:[#allocation2 + $0xd8] sm:$0xff]
    %v553 = vld [vmem:[#allocation2 + $0xe0] sm:$0xff]
    %v554 = vld [vmem:[#allocation2 + $0xe8] sm:$0xff]
    %v555 = vld [vmem:[#allocation2 + $0xf0] sm:$0xff]
    %v556 = vld [vmem:[#allocation2 + $0xf8] sm:$0xff]
    %v557 = vperm.slane %v65, 2
    %v558 = vperm.slane %v65, 6
    %v561 = vperm.slane %v557, 2
    %v562 = vperm.slane %v558, 2
    %v595 = vunpack.c.l.b16 %v525
    %v596 = vunpack.c.h.b16 %v525
    %v597 = vunpack.c.l.b16 %v526
    %v598 = vunpack.c.h.b16 %v526
    %v599 = vunpack.c.l.b16 %v527
    %v600 = vunpack.c.h.b16 %v527
    %v601 = vunpack.c.l.b16 %v528
    %v602 = vunpack.c.h.b16 %v528
    %v603 = vunpack.c.l.b16 %v529
    %v604 = vunpack.c.h.b16 %v529
    %v605 = vunpack.c.l.b16 %v530
    %v606 = vunpack.c.h.b16 %v530
    %v607 = vunpack.c.l.b16 %v531
    %v608 = vunpack.c.h.b16 %v531
    %v609 = vunpack.c.l.b16 %v532
    %v610 = vunpack.c.h.b16 %v532
    %v611 = vunpack.c.l.b16 %v533
    %v612 = vunpack.c.h.b16 %v533
    %v613 = vunpack.c.l.b16 %v534
    %v614 = vunpack.c.h.b16 %v534
    %v615 = vunpack.c.l.b16 %v535
    %v616 = vunpack.c.h.b16 %v535
    %v617 = vunpack.c.l.b16 %v536
    %v618 = vunpack.c.h.b16 %v536
    %v619 = vunpack.c.l.b16 %v537
    %v620 = vunpack.c.h.b16 %v537
    %v621 = vunpack.c.l.b16 %v538
    %v622 = vunpack.c.h.b16 %v538
    %v623 = vunpack.c.l.b16 %v539
    %v624 = vunpack.c.h.b16 %v539
    %v625 = vunpack.c.l.b16 %v540
    %v626 = vunpack.c.h.b16 %v540
    %v627 = vunpack.c.l.b16 %v541
    %v628 = vunpack.c.h.b16 %v541
    %v629 = vunpack.c.l.b16 %v542
    %v630 = vunpack.c.h.b16 %v542
    %v631 = vunpack.c.l.b16 %v543
    %v632 = vunpack.c.h.b16 %v543
    %v633 = vunpack.c.l.b16 %v544
    %v634 = vunpack.c.h.b16 %v544
    %v635 = vunpack.c.l.b16 %v545
    %v636 = vunpack.c.h.b16 %v545
    %v637 = vunpack.c.l.b16 %v546
    %v638 = vunpack.c.h.b16 %v546
    %v639 = vunpack.c.l.b16 %v547
    %v640 = vunpack.c.h.b16 %v547
    %v641 = vunpack.c.l.b16 %v548
    %v642 = vunpack.c.h.b16 %v548
    %v643 = vunpack.c.l.b16 %v549
    %v644 = vunpack.c.h.b16 %v549
    %v645 = vunpack.c.l.b16 %v550
    %v646 = vunpack.c.h.b16 %v550
    %v647 = vunpack.c.l.b16 %v551
    %v648 = vunpack.c.h.b16 %v551
    %v649 = vunpack.c.l.b16 %v552
    %v650 = vunpack.c.h.b16 %v552
    %v651 = vunpack.c.l.b16 %v553
    %v652 = vunpack.c.h.b16 %v553
    %v653 = vunpack.c.l.b16 %v554
    %v654 = vunpack.c.h.b16 %v554
    %v655 = vunpack.c.l.b16 %v555
    %v656 = vunpack.c.h.b16 %v555
    %v657 = vunpack.c.l.b16 %v556
    %v658 = vunpack.c.h.b16 %v556
    %v659 = vpack.c.b16 %v597, %v595
    %v660 = vpack.c.b16 %v598, %v596
    %v661 = vpack.c.b16 %v601, %v599
    %v662 = vpack.c.b16 %v602, %v600
    %v663 = vpack.c.b16 %v605, %v603
    %v664 = vpack.c.b16 %v606, %v604
    %v665 = vpack.c.b16 %v609, %v607
    %v666 = vpack.c.b16 %v610, %v608
    %v667 = vpack.c.b16 %v613, %v611
    %v668 = vpack.c.b16 %v614, %v612
    %v669 = vpack.c.b16 %v617, %v615
    %v670 = vpack.c.b16 %v618, %v616
    %v671 = vpack.c.b16 %v621, %v619
    %v672 = vpack.c.b16 %v622, %v620
    %v673 = vpack.c.b16 %v625, %v623
    %v674 = vpack.c.b16 %v626, %v624
    %v675 = vpack.c.b16 %v629, %v627
    %v676 = vpack.c.b16 %v630, %v628
    %v677 = vpack.c.b16 %v633, %v631
    %v678 = vpack.c.b16 %v634, %v632
    %v679 = vpack.c.b16 %v637, %v635
    %v680 = vpack.c.b16 %v638, %v636
    %v681 = vpack.c.b16 %v641, %v639
    %v682 = vpack.c.b16 %v642, %v640
    %v683 = vpack.c.b16 %v645, %v643
    %v684 = vpack.c.b16 %v646, %v644
    %v685 = vpack.c.b16 %v649, %v647
    %v686 = vpack.c.b16 %v650, %v648
    %v687 = vpack.c.b16 %v653, %v651
    %v688 = vpack.c.b16 %v654, %v652
    %v689 = vpack.c.b16 %v657, %v655
    %v690 = vpack.c.b16 %v658, %v656
    %723 = vmatpush.bf16.msra.mxu0 %v673
    %724 = vmatpush.bf16.msra.mxu0 %v671
    %725 = vmatpush.bf16.msra.mxu0 %v669
    %726 = vmatpush.bf16.msra.mxu0 %v667
    %727 = vmatpush.bf16.msra.mxu0 %v665
    %728 = vmatpush.bf16.msra.mxu0 %v663
    %729 = vmatpush.bf16.msra.mxu0 %v661
    %730 = vmatpush.bf16.msra.mxu0 %v659
    %731 = vmatmul.bf16.gmra.mxu0 %v523
    %v732 = vpop.f32.mrf.mxu0
    %v733 = vadd.f32 %v561, %v732
    %v734 = vpop.f32.mrf.mxu0
    %735 = vdwg.mxu0
    %736 = vmatpush.bf16.msra.mxu0 %v689
    %737 = vmatpush.bf16.msra.mxu0 %v687
    %738 = vmatpush.bf16.msra.mxu0 %v685
    %739 = vmatpush.bf16.msra.mxu0 %v683
    %740 = vmatpush.bf16.msra.mxu0 %v681
    %741 = vmatpush.bf16.msra.mxu0 %v679
    %742 = vmatpush.bf16.msra.mxu0 %v677
    %743 = vmatpush.bf16.msra.mxu0 %v675
    %744 = vmatmul.bf16.gmra.mxu0 %v524
    %v745 = vpop.f32.mrf.mxu0
    %v746 = vadd.f32 %v733, %v745
    %v747 = vpop.f32.mrf.mxu0
    %748 = vdwg.mxu0
    %749 = vmatpush.bf16.msra.mxu0 %v674
    %750 = vmatpush.bf16.msra.mxu0 %v672
    %751 = vmatpush.bf16.msra.mxu0 %v670
    %752 = vmatpush.bf16.msra.mxu0 %v668
    %753 = vmatpush.bf16.msra.mxu0 %v666
    %754 = vmatpush.bf16.msra.mxu0 %v664
    %755 = vmatpush.bf16.msra.mxu0 %v662
    %756 = vmatpush.bf16.msra.mxu0 %v660
    %757 = vmatmul.bf16.gmra.mxu0 %v523
    %v758 = vpop.f32.mrf.mxu0
    %v759 = vadd.f32 %v562, %v758
    %v760 = vpop.f32.mrf.mxu0
    %761 = vdwg.mxu0
    %762 = vmatpush.bf16.msra.mxu0 %v690
    %763 = vmatpush.bf16.msra.mxu0 %v688
    %764 = vmatpush.bf16.msra.mxu0 %v686
    %765 = vmatpush.bf16.msra.mxu0 %v684
    %766 = vmatpush.bf16.msra.mxu0 %v682
    %767 = vmatpush.bf16.msra.mxu0 %v680
    %768 = vmatpush.bf16.msra.mxu0 %v678
    %769 = vmatpush.bf16.msra.mxu0 %v676
    %770 = vmatmul.bf16.gmra.mxu0 %v524
    %v771 = vpop.f32.mrf.mxu0
    %v772 = vadd.f32 %v759, %v771
    %v773 = vpop.f32.mrf.mxu0
    %774 = vdwg.mxu0
    %v775 = vmax.f32 %v746, 0.0
    %v776 = vmax.f32 %v772, 0.0
    %v777 = vld [vmem:[%s1] sm:$0xf]
    %v778 = vld [vmem:[%s1 + $0x4] sm:$0xf]
    %v779 = vld [vmem:[%s1 + $0x8] sm:$0xf]
    %v780 = vld [vmem:[%s1 + $0xc] sm:$0xf]
    %v781 = vld [vmem:[%s1 + $0x10] sm:$0xf]
    %v782 = vld [vmem:[%s1 + $0x14] sm:$0xf]
    %v783 = vld [vmem:[%s1 + $0x18] sm:$0xf]
    %v784 = vld [vmem:[%s1 + $0x1c] sm:$0xf]
    %v785 = vld [vmem:[%s5] sm:$0xff]
    %v786 = vld [vmem:[%s5 + $0x8] sm:$0xff]
    %v787 = vld [vmem:[%s5 + $0x10] sm:$0xff]
    %v788 = vld [vmem:[%s5 + $0x18] sm:$0xff]
    %v789 = vperm.slane %v65, 1
    %v790 = vperm.slane %v65, 5
    %v793 = vperm.slane %v789, 1
    %v794 = vperm.slane %v790, 1
    %v803 = vunpack.c.l.b16 %v777
    %v804 = vunpack.c.l.b16 %v778
    %v805 = vunpack.c.l.b16 %v779
    %v806 = vunpack.c.l.b16 %v780
    %v807 = vunpack.c.l.b16 %v781
    %v808 = vunpack.c.l.b16 %v782
    %v809 = vunpack.c.l.b16 %v783
    %v810 = vunpack.c.l.b16 %v784
    %v811 = vpack.c.b16 %v804, %v803
    %v812 = vpack.c.b16 %v806, %v805
    %v813 = vpack.c.b16 %v808, %v807
    %v814 = vpack.c.b16 %v810, %v809
    %v819 = vunpack.c.l.b16 %v785
    %v820 = vunpack.c.h.b16 %v785
    %v821 = vunpack.c.l.b16 %v786
    %v822 = vunpack.c.h.b16 %v786
    %v823 = vunpack.c.l.b16 %v787
    %v824 = vunpack.c.h.b16 %v787
    %v825 = vunpack.c.l.b16 %v788
    %v826 = vunpack.c.h.b16 %v788
    %v827 = vpack.c.b16 %v821, %v819
    %v828 = vpack.c.b16 %v822, %v820
    %v829 = vpack.c.b16 %v825, %v823
    %v830 = vpack.c.b16 %v826, %v824
    %v836 = vsel %vm137, %v811, 0
    %v839 = vsel %vm137, %v812, 0
    %v842 = vsel %vm137, %v813, 0
    %v845 = vsel %vm137, %v814, 0
    %847 = vmatpush.bf16.msra.mxu0 0
    %848 = vmatpush.bf16.msra.mxu0 0
    %849 = vmatpush.bf16.msra.mxu0 0
    %850 = vmatpush.bf16.msra.mxu0 0
    %851 = vmatpush.bf16.msra.mxu0 0
    %852 = vmatpush.bf16.msra.mxu0 0
    %853 = vmatpush.bf16.msra.mxu0 %v829
    %854 = vmatpush.bf16.msra.mxu0 %v827
    %855 = vmatmul.bf16.gmra.mxu0 %v836
    %v856 = vpop.f32.mrf.mxu0
    %v857 = vadd.f32 %v793, %v856
    %v858 = vpop.f32.mrf.mxu0
    %v859 = vadd.f32 %v793, %v858
    %860 = vmatmul.bf16.gmra.mxu0 %v839
    %v861 = vpop.f32.mrf.mxu0
    %v862 = vadd.f32 %v793, %v861
    %v863 = vpop.f32.mrf.mxu0
    %v864 = vadd.f32 %v793, %v863
    %865 = vmatmul.bf16.gmra.mxu0 %v842
    %v866 = vpop.f32.mrf.mxu0
    %v867 = vadd.f32 %v793, %v866
    %v868 = vpop.f32.mrf.mxu0
    %v869 = vadd.f32 %v793, %v868
    %870 = vmatmul.bf16.gmra.mxu0 %v845
    %v871 = vpop.f32.mrf.mxu0
    %v872 = vadd.f32 %v793, %v871
    %v873 = vpop.f32.mrf.mxu0
    %v874 = vadd.f32 %v793, %v873
    %875 = vdwg.mxu0
    %876 = vmatpush.bf16.msra.mxu0 0
    %877 = vmatpush.bf16.msra.mxu0 0
    %878 = vmatpush.bf16.msra.mxu0 0
    %879 = vmatpush.bf16.msra.mxu0 0
    %880 = vmatpush.bf16.msra.mxu0 0
    %881 = vmatpush.bf16.msra.mxu0 0
    %882 = vmatpush.bf16.msra.mxu0 %v830
    %883 = vmatpush.bf16.msra.mxu0 %v828
    %884 = vmatmul.bf16.gmra.mxu0 %v836
    %v885 = vpop.f32.mrf.mxu0
    %v886 = vadd.f32 %v794, %v885
    %v887 = vpop.f32.mrf.mxu0
    %v888 = vadd.f32 %v794, %v887
    %889 = vmatmul.bf16.gmra.mxu0 %v839
    %v890 = vpop.f32.mrf.mxu0
    %v891 = vadd.f32 %v794, %v890
    %v892 = vpop.f32.mrf.mxu0
    %v893 = vadd.f32 %v794, %v892
    %894 = vmatmul.bf16.gmra.mxu0 %v842
    %v895 = vpop.f32.mrf.mxu0
    %v896 = vadd.f32 %v794, %v895
    %v897 = vpop.f32.mrf.mxu0
    %v898 = vadd.f32 %v794, %v897
    %899 = vmatmul.bf16.gmra.mxu0 %v845
    %v900 = vpop.f32.mrf.mxu0
    %v901 = vadd.f32 %v794, %v900
    %v902 = vpop.f32.mrf.mxu0
    %v903 = vadd.f32 %v794, %v902
    %904 = vdwg.mxu0
    %v905 = vld [vmem:[#allocation4] sm:$0xff]
    %v906 = vld [vmem:[#allocation4 + $0x8] sm:$0xff]
    %v907 = vld [vmem:[#allocation4 + $0x10] sm:$0xff]
    %v908 = vld [vmem:[#allocation4 + $0x18] sm:$0xff]
    %v909 = vld [vmem:[#allocation4 + $0x20] sm:$0xff]
    %v910 = vld [vmem:[#allocation4 + $0x28] sm:$0xff]
    %v911 = vld [vmem:[#allocation4 + $0x30] sm:$0xff]
    %v912 = vld [vmem:[#allocation4 + $0x38] sm:$0xff]
    %v913 = vld [vmem:[#allocation4 + $0x40] sm:$0xff]
    %v914 = vld [vmem:[#allocation4 + $0x48] sm:$0xff]
    %v915 = vld [vmem:[#allocation4 + $0x50] sm:$0xff]
    %v916 = vld [vmem:[#allocation4 + $0x58] sm:$0xff]
    %v917 = vld [vmem:[#allocation4 + $0x60] sm:$0xff]
    %v918 = vld [vmem:[#allocation4 + $0x68] sm:$0xff]
    %v919 = vld [vmem:[#allocation4 + $0x70] sm:$0xff]
    %v920 = vld [vmem:[#allocation4 + $0x78] sm:$0xff]
    %v921 = vld [vmem:[#allocation4 + $0x80] sm:$0xff]
    %v922 = vld [vmem:[#allocation4 + $0x88] sm:$0xff]
    %v923 = vld [vmem:[#allocation4 + $0x90] sm:$0xff]
    %v924 = vld [vmem:[#allocation4 + $0x98] sm:$0xff]
    %v925 = vld [vmem:[#allocation4 + $0xa0] sm:$0xff]
    %v926 = vld [vmem:[#allocation4 + $0xa8] sm:$0xff]
    %v927 = vld [vmem:[#allocation4 + $0xb0] sm:$0xff]
    %v928 = vld [vmem:[#allocation4 + $0xb8] sm:$0xff]
    %v929 = vld [vmem:[#allocation4 + $0xc0] sm:$0xff]
    %v930 = vld [vmem:[#allocation4 + $0xc8] sm:$0xff]
    %v931 = vld [vmem:[#allocation4 + $0xd0] sm:$0xff]
    %v932 = vld [vmem:[#allocation4 + $0xd8] sm:$0xff]
    %v933 = vld [vmem:[#allocation4 + $0xe0] sm:$0xff]
    %v934 = vld [vmem:[#allocation4 + $0xe8] sm:$0xff]
    %v935 = vld [vmem:[#allocation4 + $0xf0] sm:$0xff]
    %v936 = vld [vmem:[#allocation4 + $0xf8] sm:$0xff]
    %v937 = vpack.c.bf16 %v775, %v775
    %v938 = vpack.c.bf16 %v776, %v776
    %v971 = vunpack.c.l.b16 %v905
    %v972 = vunpack.c.h.b16 %v905
    %v973 = vunpack.c.l.b16 %v906
    %v974 = vunpack.c.h.b16 %v906
    %v975 = vunpack.c.l.b16 %v907
    %v976 = vunpack.c.h.b16 %v907
    %v977 = vunpack.c.l.b16 %v908
    %v978 = vunpack.c.h.b16 %v908
    %v979 = vunpack.c.l.b16 %v909
    %v980 = vunpack.c.h.b16 %v909
    %v981 = vunpack.c.l.b16 %v910
    %v982 = vunpack.c.h.b16 %v910
    %v983 = vunpack.c.l.b16 %v911
    %v984 = vunpack.c.h.b16 %v911
    %v985 = vunpack.c.l.b16 %v912
    %v986 = vunpack.c.h.b16 %v912
    %v987 = vunpack.c.l.b16 %v913
    %v988 = vunpack.c.h.b16 %v913
    %v989 = vunpack.c.l.b16 %v914
    %v990 = vunpack.c.h.b16 %v914
    %v991 = vunpack.c.l.b16 %v915
    %v992 = vunpack.c.h.b16 %v915
    %v993 = vunpack.c.l.b16 %v916
    %v994 = vunpack.c.h.b16 %v916
    %v995 = vunpack.c.l.b16 %v917
    %v996 = vunpack.c.h.b16 %v917
    %v997 = vunpack.c.l.b16 %v918
    %v998 = vunpack.c.h.b16 %v918
    %v999 = vunpack.c.l.b16 %v919
    %v1000 = vunpack.c.h.b16 %v919
    %v1001 = vunpack.c.l.b16 %v920
    %v1002 = vunpack.c.h.b16 %v920
    %v1003 = vunpack.c.l.b16 %v921
    %v1004 = vunpack.c.h.b16 %v921
    %v1005 = vunpack.c.l.b16 %v922
    %v1006 = vunpack.c.h.b16 %v922
    %v1007 = vunpack.c.l.b16 %v923
    %v1008 = vunpack.c.h.b16 %v923
    %v1009 = vunpack.c.l.b16 %v924
    %v1010 = vunpack.c.h.b16 %v924
    %v1011 = vunpack.c.l.b16 %v925
    %v1012 = vunpack.c.h.b16 %v925
    %v1013 = vunpack.c.l.b16 %v926
    %v1014 = vunpack.c.h.b16 %v926
    %v1015 = vunpack.c.l.b16 %v927
    %v1016 = vunpack.c.h.b16 %v927
    %v1017 = vunpack.c.l.b16 %v928
    %v1018 = vunpack.c.h.b16 %v928
    %v1019 = vunpack.c.l.b16 %v929
    %v1020 = vunpack.c.h.b16 %v929
    %v1021 = vunpack.c.l.b16 %v930
    %v1022 = vunpack.c.h.b16 %v930
    %v1023 = vunpack.c.l.b16 %v931
    %v1024 = vunpack.c.h.b16 %v931
    %v1025 = vunpack.c.l.b16 %v932
    %v1026 = vunpack.c.h.b16 %v932
    %v1027 = vunpack.c.l.b16 %v933
    %v1028 = vunpack.c.h.b16 %v933
    %v1029 = vunpack.c.l.b16 %v934
    %v1030 = vunpack.c.h.b16 %v934
    %v1031 = vunpack.c.l.b16 %v935
    %v1032 = vunpack.c.h.b16 %v935
    %v1033 = vunpack.c.l.b16 %v936
    %v1034 = vunpack.c.h.b16 %v936
    %v1035 = vpack.c.b16 %v973, %v971
    %v1036 = vpack.c.b16 %v974, %v972
    %v1037 = vpack.c.b16 %v977, %v975
    %v1038 = vpack.c.b16 %v978, %v976
    %v1039 = vpack.c.b16 %v981, %v979
    %v1040 = vpack.c.b16 %v982, %v980
    %v1041 = vpack.c.b16 %v985, %v983
    %v1042 = vpack.c.b16 %v986, %v984
    %v1043 = vpack.c.b16 %v989, %v987
    %v1044 = vpack.c.b16 %v990, %v988
    %v1045 = vpack.c.b16 %v993, %v991
    %v1046 = vpack.c.b16 %v994, %v992
    %v1047 = vpack.c.b16 %v997, %v995
    %v1048 = vpack.c.b16 %v998, %v996
    %v1049 = vpack.c.b16 %v1001, %v999
    %v1050 = vpack.c.b16 %v1002, %v1000
    %v1051 = vpack.c.b16 %v1005, %v1003
    %v1052 = vpack.c.b16 %v1006, %v1004
    %v1053 = vpack.c.b16 %v1009, %v1007
    %v1054 = vpack.c.b16 %v1010, %v1008
    %v1055 = vpack.c.b16 %v1013, %v1011
    %v1056 = vpack.c.b16 %v1014, %v1012
    %v1057 = vpack.c.b16 %v1017, %v1015
    %v1058 = vpack.c.b16 %v1018, %v1016
    %v1059 = vpack.c.b16 %v1021, %v1019
    %v1060 = vpack.c.b16 %v1022, %v1020
    %v1061 = vpack.c.b16 %v1025, %v1023
    %v1062 = vpack.c.b16 %v1026, %v1024
    %v1063 = vpack.c.b16 %v1029, %v1027
    %v1064 = vpack.c.b16 %v1030, %v1028
    %v1065 = vpack.c.b16 %v1033, %v1031
    %v1066 = vpack.c.b16 %v1034, %v1032
    %1099 = vmatpush.bf16.msra.mxu0 %v1049
    %1100 = vmatpush.bf16.msra.mxu0 %v1047
    %1101 = vmatpush.bf16.msra.mxu0 %v1045
    %1102 = vmatpush.bf16.msra.mxu0 %v1043
    %1103 = vmatpush.bf16.msra.mxu0 %v1041
    %1104 = vmatpush.bf16.msra.mxu0 %v1039
    %1105 = vmatpush.bf16.msra.mxu0 %v1037
    %1106 = vmatpush.bf16.msra.mxu0 %v1035
    %1107 = vmatmul.bf16.gmra.mxu0 %v937
    %v1108 = vpop.f32.mrf.mxu0
    %v1109 = vadd.f32 0.0, %v1108
    %v1110 = vpop.f32.mrf.mxu0
    %1111 = vdwg.mxu0
    %1112 = vmatpush.bf16.msra.mxu0 %v1065
    %1113 = vmatpush.bf16.msra.mxu0 %v1063
    %1114 = vmatpush.bf16.msra.mxu0 %v1061
    %1115 = vmatpush.bf16.msra.mxu0 %v1059
    %1116 = vmatpush.bf16.msra.mxu0 %v1057
    %1117 = vmatpush.bf16.msra.mxu0 %v1055
    %1118 = vmatpush.bf16.msra.mxu0 %v1053
    %1119 = vmatpush.bf16.msra.mxu0 %v1051
    %1120 = vmatmul.bf16.gmra.mxu0 %v938
    %v1121 = vpop.f32.mrf.mxu0
    %v1122 = vadd.f32 %v1109, %v1121
    %v1123 = vpop.f32.mrf.mxu0
    %1124 = vdwg.mxu0
    %1125 = vmatpush.bf16.msra.mxu0 %v1050
    %1126 = vmatpush.bf16.msra.mxu0 %v1048
    %1127 = vmatpush.bf16.msra.mxu0 %v1046
    %1128 = vmatpush.bf16.msra.mxu0 %v1044
    %1129 = vmatpush.bf16.msra.mxu0 %v1042
    %1130 = vmatpush.bf16.msra.mxu0 %v1040
    %1131 = vmatpush.bf16.msra.mxu0 %v1038
    %1132 = vmatpush.bf16.msra.mxu0 %v1036
    %1133 = vmatmul.bf16.gmra.mxu0 %v937
    %v1134 = vpop.f32.mrf.mxu0
    %v1135 = vadd.f32 0.0, %v1134
    %v1136 = vpop.f32.mrf.mxu0
    %1137 = vdwg.mxu0
    %1138 = vmatpush.bf16.msra.mxu0 %v1066
    %1139 = vmatpush.bf16.msra.mxu0 %v1064
    %1140 = vmatpush.bf16.msra.mxu0 %v1062
    %1141 = vmatpush.bf16.msra.mxu0 %v1060
    %1142 = vmatpush.bf16.msra.mxu0 %v1058
    %1143 = vmatpush.bf16.msra.mxu0 %v1056
    %1144 = vmatpush.bf16.msra.mxu0 %v1054
    %1145 = vmatpush.bf16.msra.mxu0 %v1052
    %1146 = vmatmul.bf16.gmra.mxu0 %v938
    %v1147 = vpop.f32.mrf.mxu0
    %v1148 = vadd.f32 %v1135, %v1147
    %v1149 = vpop.f32.mrf.mxu0
    %1150 = vdwg.mxu0
    %v1151 = vadd.f32 %v857, %v1122
    %v1152 = vadd.f32 %v886, %v1148
    %v1153 = vmul.f32 %v1151, 0.5
    %v1154 = vmul.f32 %v1152, 0.5
    %v1155 = vsel %vm76, %v1151, %v1153
    %v1156 = vsel %vm77, %v1152, %v1154
    %v1157 = vtanh.pop %v1155
    %v1158 = vtanh.pop %v1156
    %v1159 = vmul.f32 %v1157, 0.5
    %v1160 = vmul.f32 %v1158, 0.5
    %v1161 = vadd.f32 %v1159, 0.5
    %v1162 = vadd.f32 %v1160, 0.5
    %v1163 = vsel %vm76, %v1157, %v1161
    %v1164 = vsel %vm77, %v1158, %v1162
    %v1165 = vmul.f32 %v1163, %v1164
    %v1166 = vmul.f32 %v1163, 0.0
    %v1167 = vmul.f32 %v1164, 0.0
    %1168 = vrot.lane.b32.xlu0 %v1165, 64
    %v1169 = vpop.permute.xlu0 %1168
    %v1170 = vadd.f32 %v1166, %v1169
    %v1171 = vadd.f32 %v1167, %v1169
    %v1172 = vtanh.pop %v1171
    %v1173 = vtanh.pop %v1170
    %v1174 = vmul.f32 %v1163, %v1172
    %v1175 = vmul.f32 %v1164, %v1173
    %v1176 = vpack.c.bf16 %v1174, %v1174
    %v1177 = vpack.c.bf16 %v1175, %v1175
    %1178 = vmatpush.bf16.msra.mxu0 %v1049
    %1179 = vmatpush.bf16.msra.mxu0 %v1047
    %1180 = vmatpush.bf16.msra.mxu0 %v1045
    %1181 = vmatpush.bf16.msra.mxu0 %v1043
    %1182 = vmatpush.bf16.msra.mxu0 %v1041
    %1183 = vmatpush.bf16.msra.mxu0 %v1039
    %1184 = vmatpush.bf16.msra.mxu0 %v1037
    %1185 = vmatpush.bf16.msra.mxu0 %v1035
    %1186 = vmatmul.bf16.gmra.mxu0 %v1176
    %v1187 = vpop.f32.mrf.mxu0
    %v1188 = vadd.f32 0.0, %v1187
    %v1189 = vpop.f32.mrf.mxu0
    %1190 = vdwg.mxu0
    %1191 = vmatpush.bf16.msra.mxu0 %v1065
    %1192 = vmatpush.bf16.msra.mxu0 %v1063
    %1193 = vmatpush.bf16.msra.mxu0 %v1061
    %1194 = vmatpush.bf16.msra.mxu0 %v1059
    %1195 = vmatpush.bf16.msra.mxu0 %v1057
    %1196 = vmatpush.bf16.msra.mxu0 %v1055
    %1197 = vmatpush.bf16.msra.mxu0 %v1053
    %1198 = vmatpush.bf16.msra.mxu0 %v1051
    %1199 = vmatmul.bf16.gmra.mxu0 %v1177
    %v1200 = vpop.f32.mrf.mxu0
    %v1201 = vadd.f32 %v1188, %v1200
    %v1202 = vpop.f32.mrf.mxu0
    %1203 = vdwg.mxu0
    %1204 = vmatpush.bf16.msra.mxu0 %v1050
    %1205 = vmatpush.bf16.msra.mxu0 %v1048
    %1206 = vmatpush.bf16.msra.mxu0 %v1046
    %1207 = vmatpush.bf16.msra.mxu0 %v1044
    %1208 = vmatpush.bf16.msra.mxu0 %v1042
    %1209 = vmatpush.bf16.msra.mxu0 %v1040
    %1210 = vmatpush.bf16.msra.mxu0 %v1038
    %1211 = vmatpush.bf16.msra.mxu0 %v1036
    %1212 = vmatmul.bf16.gmra.mxu0 %v1176
    %v1213 = vpop.f32.mrf.mxu0
    %v1214 = vadd.f32 0.0, %v1213
    %v1215 = vpop.f32.mrf.mxu0
    %1216 = vdwg.mxu0
    %1217 = vmatpush.bf16.msra.mxu0 %v1066
    %1218 = vmatpush.bf16.msra.mxu0 %v1064
    %1219 = vmatpush.bf16.msra.mxu0 %v1062
    %1220 = vmatpush.bf16.msra.mxu0 %v1060
    %1221 = vmatpush.bf16.msra.mxu0 %v1058
    %1222 = vmatpush.bf16.msra.mxu0 %v1056
    %1223 = vmatpush.bf16.msra.mxu0 %v1054
    %1224 = vmatpush.bf16.msra.mxu0 %v1052
    %1225 = vmatmul.bf16.gmra.mxu0 %v1177
    %v1226 = vpop.f32.mrf.mxu0
    %v1227 = vadd.f32 %v1214, %v1226
    %v1228 = vpop.f32.mrf.mxu0
    %1229 = vdwg.mxu0
    %v1230 = vadd.f32 %v859, %v1201
    %v1231 = vadd.f32 %v888, %v1227
    %v1232 = vmul.f32 %v1230, 0.5
    %v1233 = vmul.f32 %v1231, 0.5
    %v1234 = vsel %vm76, %v1230, %v1232
    %v1235 = vsel %vm77, %v1231, %v1233
    %v1236 = vtanh.pop %v1234
    %v1237 = vtanh.pop %v1235
    %v1238 = vmul.f32 %v1236, 0.5
    %v1239 = vmul.f32 %v1237, 0.5
    %v1240 = vadd.f32 %v1238, 0.5
    %v1241 = vadd.f32 %v1239, 0.5
    %v1242 = vsel %vm76, %v1236, %v1240
    %v1243 = vsel %vm77, %v1237, %v1241
    %v1244 = vmul.f32 %v1242, %v1243
    %v1245 = vmul.f32 %v1242, %v1170
    %v1246 = vmul.f32 %v1243, %v1171
    %1247 = vrot.lane.b32.xlu0 %v1244, 64
    %v1248 = vpop.permute.xlu0 %1247
    %v1249 = vadd.f32 %v1245, %v1248
    %v1250 = vadd.f32 %v1246, %v1248
    %v1251 = vtanh.pop %v1250
    %v1252 = vtanh.pop %v1249
    %v1253 = vmul.f32 %v1242, %v1251
    %v1254 = vmul.f32 %v1243, %v1252
    %v1255 = vpack.c.bf16 %v1253, %v1253
    %v1256 = vpack.c.bf16 %v1254, %v1254
    %1257 = vmatpush.bf16.msra.mxu0 %v1049
    %1258 = vmatpush.bf16.msra.mxu0 %v1047
    %1259 = vmatpush.bf16.msra.mxu0 %v1045
    %1260 = vmatpush.bf16.msra.mxu0 %v1043
    %1261 = vmatpush.bf16.msra.mxu0 %v1041
    %1262 = vmatpush.bf16.msra.mxu0 %v1039
    %1263 = vmatpush.bf16.msra.mxu0 %v1037
    %1264 = vmatpush.bf16.msra.mxu0 %v1035
    %1265 = vmatmul.bf16.gmra.mxu0 %v1255
    %v1266 = vpop.f32.mrf.mxu0
    %v1267 = vadd.f32 0.0, %v1266
    %v1268 = vpop.f32.mrf.mxu0
    %1269 = vdwg.mxu0
    %1270 = vmatpush.bf16.msra.mxu0 %v1065
    %1271 = vmatpush.bf16.msra.mxu0 %v1063
    %1272 = vmatpush.bf16.msra.mxu0 %v1061
    %1273 = vmatpush.bf16.msra.mxu0 %v1059
    %1274 = vmatpush.bf16.msra.mxu0 %v1057
    %1275 = vmatpush.bf16.msra.mxu0 %v1055
    %1276 = vmatpush.bf16.msra.mxu0 %v1053
    %1277 = vmatpush.bf16.msra.mxu0 %v1051
    %1278 = vmatmul.bf16.gmra.mxu0 %v1256
    %v1279 = vpop.f32.mrf.mxu0
    %v1280 = vadd.f32 %v1267, %v1279
    %v1281 = vpop.f32.mrf.mxu0
    %1282 = vdwg.mxu0
    %1283 = vmatpush.bf16.msra.mxu0 %v1050
    %1284 = vmatpush.bf16.msra.mxu0 %v1048
    %1285 = vmatpush.bf16.msra.mxu0 %v1046
    %1286 = vmatpush.bf16.msra.mxu0 %v1044
    %1287 = vmatpush.bf16.msra.mxu0 %v1042
    %1288 = vmatpush.bf16.msra.mxu0 %v1040
    %1289 = vmatpush.bf16.msra.mxu0 %v1038
    %1290 = vmatpush.bf16.msra.mxu0 %v1036
    %1291 = vmatmul.bf16.gmra.mxu0 %v1255
    %v1292 = vpop.f32.mrf.mxu0
    %v1293 = vadd.f32 0.0, %v1292
    %v1294 = vpop.f32.mrf.mxu0
    %1295 = vdwg.mxu0
    %1296 = vmatpush.bf16.msra.mxu0 %v1066
    %1297 = vmatpush.bf16.msra.mxu0 %v1064
    %1298 = vmatpush.bf16.msra.mxu0 %v1062
    %1299 = vmatpush.bf16.msra.mxu0 %v1060
    %1300 = vmatpush.bf16.msra.mxu0 %v1058
    %1301 = vmatpush.bf16.msra.mxu0 %v1056
    %1302 = vmatpush.bf16.msra.mxu0 %v1054
    %1303 = vmatpush.bf16.msra.mxu0 %v1052
    %1304 = vmatmul.bf16.gmra.mxu0 %v1256
    %v1305 = vpop.f32.mrf.mxu0
    %v1306 = vadd.f32 %v1293, %v1305
    %v1307 = vpop.f32.mrf.mxu0
    %1308 = vdwg.mxu0
    %v1309 = vadd.f32 %v862, %v1280
    %v1310 = vadd.f32 %v891, %v1306
    %v1311 = vmul.f32 %v1309, 0.5
    %v1312 = vmul.f32 %v1310, 0.5
    %v1313 = vsel %vm76, %v1309, %v1311
    %v1314 = vsel %vm77, %v1310, %v1312
    %v1315 = vtanh.pop %v1313
    %v1316 = vtanh.pop %v1314
    %v1317 = vmul.f32 %v1315, 0.5
    %v1318 = vmul.f32 %v1316, 0.5
    %v1319 = vadd.f32 %v1317, 0.5
    %v1320 = vadd.f32 %v1318, 0.5
    %v1321 = vsel %vm76, %v1315, %v1319
    %v1322 = vsel %vm77, %v1316, %v1320
    %v1323 = vmul.f32 %v1321, %v1322
    %v1324 = vmul.f32 %v1321, %v1249
    %v1325 = vmul.f32 %v1322, %v1250
    %1326 = vrot.lane.b32.xlu0 %v1323, 64
    %v1327 = vpop.permute.xlu0 %1326
    %v1328 = vadd.f32 %v1324, %v1327
    %v1329 = vadd.f32 %v1325, %v1327
    %v1330 = vtanh.pop %v1329
    %v1331 = vtanh.pop %v1328
    %v1332 = vmul.f32 %v1321, %v1330
    %v1333 = vmul.f32 %v1322, %v1331
    %v1334 = vpack.c.bf16 %v1332, %v1332
    %v1335 = vpack.c.bf16 %v1333, %v1333
    %1336 = vmatpush.bf16.msra.mxu0 %v1049
    %1337 = vmatpush.bf16.msra.mxu0 %v1047
    %1338 = vmatpush.bf16.msra.mxu0 %v1045
    %1339 = vmatpush.bf16.msra.mxu0 %v1043
    %1340 = vmatpush.bf16.msra.mxu0 %v1041
    %1341 = vmatpush.bf16.msra.mxu0 %v1039
    %1342 = vmatpush.bf16.msra.mxu0 %v1037
    %1343 = vmatpush.bf16.msra.mxu0 %v1035
    %1344 = vmatmul.bf16.gmra.mxu0 %v1334
    %v1345 = vpop.f32.mrf.mxu0
    %v1346 = vadd.f32 0.0, %v1345
    %v1347 = vpop.f32.mrf.mxu0
    %1348 = vdwg.mxu0
    %1349 = vmatpush.bf16.msra.mxu0 %v1065
    %1350 = vmatpush.bf16.msra.mxu0 %v1063
    %1351 = vmatpush.bf16.msra.mxu0 %v1061
    %1352 = vmatpush.bf16.msra.mxu0 %v1059
    %1353 = vmatpush.bf16.msra.mxu0 %v1057
    %1354 = vmatpush.bf16.msra.mxu0 %v1055
    %1355 = vmatpush.bf16.msra.mxu0 %v1053
    %1356 = vmatpush.bf16.msra.mxu0 %v1051
    %1357 = vmatmul.bf16.gmra.mxu0 %v1335
    %v1358 = vpop.f32.mrf.mxu0
    %v1359 = vadd.f32 %v1346, %v1358
    %v1360 = vpop.f32.mrf.mxu0
    %1361 = vdwg.mxu0
    %1362 = vmatpush.bf16.msra.mxu0 %v1050
    %1363 = vmatpush.bf16.msra.mxu0 %v1048
    %1364 = vmatpush.bf16.msra.mxu0 %v1046
    %1365 = vmatpush.bf16.msra.mxu0 %v1044
    %1366 = vmatpush.bf16.msra.mxu0 %v1042
    %1367 = vmatpush.bf16.msra.mxu0 %v1040
    %1368 = vmatpush.bf16.msra.mxu0 %v1038
    %1369 = vmatpush.bf16.msra.mxu0 %v1036
    %1370 = vmatmul.bf16.gmra.mxu0 %v1334
    %v1371 = vpop.f32.mrf.mxu0
    %v1372 = vadd.f32 0.0, %v1371
    %v1373 = vpop.f32.mrf.mxu0
    %1374 = vdwg.mxu0
    %1375 = vmatpush.bf16.msra.mxu0 %v1066
    %1376 = vmatpush.bf16.msra.mxu0 %v1064
    %1377 = vmatpush.bf16.msra.mxu0 %v1062
    %1378 = vmatpush.bf16.msra.mxu0 %v1060
    %1379 = vmatpush.bf16.msra.mxu0 %v1058
    %1380 = vmatpush.bf16.msra.mxu0 %v1056
    %1381 = vmatpush.bf16.msra.mxu0 %v1054
    %1382 = vmatpush.bf16.msra.mxu0 %v1052
    %1383 = vmatmul.bf16.gmra.mxu0 %v1335
    %v1384 = vpop.f32.mrf.mxu0
    %v1385 = vadd.f32 %v1372, %v1384
    %v1386 = vpop.f32.mrf.mxu0
    %1387 = vdwg.mxu0
    %v1388 = vadd.f32 %v864, %v1359
    %v1389 = vadd.f32 %v893, %v1385
    %v1390 = vmul.f32 %v1388, 0.5
    %v1391 = vmul.f32 %v1389, 0.5
    %v1392 = vsel %vm76, %v1388, %v1390
    %v1393 = vsel %vm77, %v1389, %v1391
    %v1394 = vtanh.pop %v1392
    %v1395 = vtanh.pop %v1393
    %v1396 = vmul.f32 %v1394, 0.5
    %v1397 = vmul.f32 %v1395, 0.5
    %v1398 = vadd.f32 %v1396, 0.5
    %v1399 = vadd.f32 %v1397, 0.5
    %v1400 = vsel %vm76, %v1394, %v1398
    %v1401 = vsel %vm77, %v1395, %v1399
    %v1402 = vmul.f32 %v1400, %v1401
    %v1403 = vmul.f32 %v1400, %v1328
    %v1404 = vmul.f32 %v1401, %v1329
    %1405 = vrot.lane.b32.xlu0 %v1402, 64
    %v1406 = vpop.permute.xlu0 %1405
    %v1407 = vadd.f32 %v1403, %v1406
    %v1408 = vadd.f32 %v1404, %v1406
    %v1409 = vtanh.pop %v1408
    %v1410 = vtanh.pop %v1407
    %v1411 = vmul.f32 %v1400, %v1409
    %v1412 = vmul.f32 %v1401, %v1410
    %v1413 = vpack.c.bf16 %v1411, %v1411
    %v1414 = vpack.c.bf16 %v1412, %v1412
    %1415 = vmatpush.bf16.msra.mxu0 %v1049
    %1416 = vmatpush.bf16.msra.mxu0 %v1047
    %1417 = vmatpush.bf16.msra.mxu0 %v1045
    %1418 = vmatpush.bf16.msra.mxu0 %v1043
    %1419 = vmatpush.bf16.msra.mxu0 %v1041
    %1420 = vmatpush.bf16.msra.mxu0 %v1039
    %1421 = vmatpush.bf16.msra.mxu0 %v1037
    %1422 = vmatpush.bf16.msra.mxu0 %v1035
    %1423 = vmatmul.bf16.gmra.mxu0 %v1413
    %v1424 = vpop.f32.mrf.mxu0
    %v1425 = vadd.f32 0.0, %v1424
    %v1426 = vpop.f32.mrf.mxu0
    %1427 = vdwg.mxu0
    %1428 = vmatpush.bf16.msra.mxu0 %v1065
    %1429 = vmatpush.bf16.msra.mxu0 %v1063
    %1430 = vmatpush.bf16.msra.mxu0 %v1061
    %1431 = vmatpush.bf16.msra.mxu0 %v1059
    %1432 = vmatpush.bf16.msra.mxu0 %v1057
    %1433 = vmatpush.bf16.msra.mxu0 %v1055
    %1434 = vmatpush.bf16.msra.mxu0 %v1053
    %1435 = vmatpush.bf16.msra.mxu0 %v1051
    %1436 = vmatmul.bf16.gmra.mxu0 %v1414
    %v1437 = vpop.f32.mrf.mxu0
    %v1438 = vadd.f32 %v1425, %v1437
    %v1439 = vpop.f32.mrf.mxu0
    %1440 = vdwg.mxu0
    %1441 = vmatpush.bf16.msra.mxu0 %v1050
    %1442 = vmatpush.bf16.msra.mxu0 %v1048
    %1443 = vmatpush.bf16.msra.mxu0 %v1046
    %1444 = vmatpush.bf16.msra.mxu0 %v1044
    %1445 = vmatpush.bf16.msra.mxu0 %v1042
    %1446 = vmatpush.bf16.msra.mxu0 %v1040
    %1447 = vmatpush.bf16.msra.mxu0 %v1038
    %1448 = vmatpush.bf16.msra.mxu0 %v1036
    %1449 = vmatmul.bf16.gmra.mxu0 %v1413
    %v1450 = vpop.f32.mrf.mxu0
    %v1451 = vadd.f32 0.0, %v1450
    %v1452 = vpop.f32.mrf.mxu0
    %1453 = vdwg.mxu0
    %1454 = vmatpush.bf16.msra.mxu0 %v1066
    %1455 = vmatpush.bf16.msra.mxu0 %v1064
    %1456 = vmatpush.bf16.msra.mxu0 %v1062
    %1457 = vmatpush.bf16.msra.mxu0 %v1060
    %1458 = vmatpush.bf16.msra.mxu0 %v1058
    %1459 = vmatpush.bf16.msra.mxu0 %v1056
    %1460 = vmatpush.bf16.msra.mxu0 %v1054
    %1461 = vmatpush.bf16.msra.mxu0 %v1052
    %1462 = vmatmul.bf16.gmra.mxu0 %v1414
    %v1463 = vpop.f32.mrf.mxu0
    %v1464 = vadd.f32 %v1451, %v1463
    %v1465 = vpop.f32.mrf.mxu0
    %1466 = vdwg.mxu0
    %v1467 = vadd.f32 %v867, %v1438
    %v1468 = vadd.f32 %v896, %v1464
    %v1469 = vmul.f32 %v1467, 0.5
    %v1470 = vmul.f32 %v1468, 0.5
    %v1471 = vsel %vm76, %v1467, %v1469
    %v1472 = vsel %vm77, %v1468, %v1470
    %v1473 = vtanh.pop %v1471
    %v1474 = vtanh.pop %v1472
    %v1475 = vmul.f32 %v1473, 0.5
    %v1476 = vmul.f32 %v1474, 0.5
    %v1477 = vadd.f32 %v1475, 0.5
    %v1478 = vadd.f32 %v1476, 0.5
    %v1479 = vsel %vm76, %v1473, %v1477
    %v1480 = vsel %vm77, %v1474, %v1478
    %v1481 = vmul.f32 %v1479, %v1480
    %v1482 = vmul.f32 %v1479, %v1407
    %v1483 = vmul.f32 %v1480, %v1408
    %1484 = vrot.lane.b32.xlu0 %v1481, 64
    %v1485 = vpop.permute.xlu0 %1484
    %v1486 = vadd.f32 %v1482, %v1485
    %v1487 = vadd.f32 %v1483, %v1485
    %v1488 = vtanh.pop %v1487
    %v1489 = vtanh.pop %v1486
    %v1490 = vmul.f32 %v1479, %v1488
    %v1491 = vmul.f32 %v1480, %v1489
    %v1492 = vpack.c.bf16 %v1490, %v1490
    %v1493 = vpack.c.bf16 %v1491, %v1491
    %1494 = vmatpush.bf16.msra.mxu0 %v1049
    %1495 = vmatpush.bf16.msra.mxu0 %v1047
    %1496 = vmatpush.bf16.msra.mxu0 %v1045
    %1497 = vmatpush.bf16.msra.mxu0 %v1043
    %1498 = vmatpush.bf16.msra.mxu0 %v1041
    %1499 = vmatpush.bf16.msra.mxu0 %v1039
    %1500 = vmatpush.bf16.msra.mxu0 %v1037
    %1501 = vmatpush.bf16.msra.mxu0 %v1035
    %1502 = vmatmul.bf16.gmra.mxu0 %v1492
    %v1503 = vpop.f32.mrf.mxu0
    %v1504 = vadd.f32 0.0, %v1503
    %v1505 = vpop.f32.mrf.mxu0
    %1506 = vdwg.mxu0
    %1507 = vmatpush.bf16.msra.mxu0 %v1065
    %1508 = vmatpush.bf16.msra.mxu0 %v1063
    %1509 = vmatpush.bf16.msra.mxu0 %v1061
    %1510 = vmatpush.bf16.msra.mxu0 %v1059
    %1511 = vmatpush.bf16.msra.mxu0 %v1057
    %1512 = vmatpush.bf16.msra.mxu0 %v1055
    %1513 = vmatpush.bf16.msra.mxu0 %v1053
    %1514 = vmatpush.bf16.msra.mxu0 %v1051
    %1515 = vmatmul.bf16.gmra.mxu0 %v1493
    %v1516 = vpop.f32.mrf.mxu0
    %v1517 = vadd.f32 %v1504, %v1516
    %v1518 = vpop.f32.mrf.mxu0
    %1519 = vdwg.mxu0
    %1520 = vmatpush.bf16.msra.mxu0 %v1050
    %1521 = vmatpush.bf16.msra.mxu0 %v1048
    %1522 = vmatpush.bf16.msra.mxu0 %v1046
    %1523 = vmatpush.bf16.msra.mxu0 %v1044
    %1524 = vmatpush.bf16.msra.mxu0 %v1042
    %1525 = vmatpush.bf16.msra.mxu0 %v1040
    %1526 = vmatpush.bf16.msra.mxu0 %v1038
    %1527 = vmatpush.bf16.msra.mxu0 %v1036
    %1528 = vmatmul.bf16.gmra.mxu0 %v1492
    %v1529 = vpop.f32.mrf.mxu0
    %v1530 = vadd.f32 0.0, %v1529
    %v1531 = vpop.f32.mrf.mxu0
    %1532 = vdwg.mxu0
    %1533 = vmatpush.bf16.msra.mxu0 %v1066
    %1534 = vmatpush.bf16.msra.mxu0 %v1064
    %1535 = vmatpush.bf16.msra.mxu0 %v1062
    %1536 = vmatpush.bf16.msra.mxu0 %v1060
    %1537 = vmatpush.bf16.msra.mxu0 %v1058
    %1538 = vmatpush.bf16.msra.mxu0 %v1056
    %1539 = vmatpush.bf16.msra.mxu0 %v1054
    %1540 = vmatpush.bf16.msra.mxu0 %v1052
    %1541 = vmatmul.bf16.gmra.mxu0 %v1493
    %v1542 = vpop.f32.mrf.mxu0
    %v1543 = vadd.f32 %v1530, %v1542
    %v1544 = vpop.f32.mrf.mxu0
    %1545 = vdwg.mxu0
    %v1546 = vadd.f32 %v869, %v1517
    %v1547 = vadd.f32 %v898, %v1543
    %v1548 = vmul.f32 %v1546, 0.5
    %v1549 = vmul.f32 %v1547, 0.5
    %v1550 = vsel %vm76, %v1546, %v1548
    %v1551 = vsel %vm77, %v1547, %v1549
    %v1552 = vtanh.pop %v1550
    %v1553 = vtanh.pop %v1551
    %v1554 = vmul.f32 %v1552, 0.5
    %v1555 = vmul.f32 %v1553, 0.5
    %v1556 = vadd.f32 %v1554, 0.5
    %v1557 = vadd.f32 %v1555, 0.5
    %v1558 = vsel %vm76, %v1552, %v1556
    %v1559 = vsel %vm77, %v1553, %v1557
    %v1560 = vmul.f32 %v1558, %v1559
    %v1561 = vmul.f32 %v1558, %v1486
    %v1562 = vmul.f32 %v1559, %v1487
    %1563 = vrot.lane.b32.xlu0 %v1560, 64
    %v1564 = vpop.permute.xlu0 %1563
    %v1565 = vadd.f32 %v1561, %v1564
    %v1566 = vadd.f32 %v1562, %v1564
    %v1567 = vtanh.pop %v1566
    %v1568 = vtanh.pop %v1565
    %v1569 = vmul.f32 %v1558, %v1567
    %v1570 = vmul.f32 %v1559, %v1568
    %v1571 = vpack.c.bf16 %v1569, %v1569
    %v1572 = vpack.c.bf16 %v1570, %v1570
    %1573 = vmatpush.bf16.msra.mxu0 %v1049
    %1574 = vmatpush.bf16.msra.mxu0 %v1047
    %1575 = vmatpush.bf16.msra.mxu0 %v1045
    %1576 = vmatpush.bf16.msra.mxu0 %v1043
    %1577 = vmatpush.bf16.msra.mxu0 %v1041
    %1578 = vmatpush.bf16.msra.mxu0 %v1039
    %1579 = vmatpush.bf16.msra.mxu0 %v1037
    %1580 = vmatpush.bf16.msra.mxu0 %v1035
    %1581 = vmatmul.bf16.gmra.mxu0 %v1571
    %v1582 = vpop.f32.mrf.mxu0
    %v1583 = vadd.f32 0.0, %v1582
    %v1584 = vpop.f32.mrf.mxu0
    %1585 = vdwg.mxu0
    %1586 = vmatpush.bf16.msra.mxu0 %v1065
    %1587 = vmatpush.bf16.msra.mxu0 %v1063
    %1588 = vmatpush.bf16.msra.mxu0 %v1061
    %1589 = vmatpush.bf16.msra.mxu0 %v1059
    %1590 = vmatpush.bf16.msra.mxu0 %v1057
    %1591 = vmatpush.bf16.msra.mxu0 %v1055
    %1592 = vmatpush.bf16.msra.mxu0 %v1053
    %1593 = vmatpush.bf16.msra.mxu0 %v1051
    %1594 = vmatmul.bf16.gmra.mxu0 %v1572
    %v1595 = vpop.f32.mrf.mxu0
    %v1596 = vadd.f32 %v1583, %v1595
    %v1597 = vpop.f32.mrf.mxu0
    %1598 = vdwg.mxu0
    %1599 = vmatpush.bf16.msra.mxu0 %v1050
    %1600 = vmatpush.bf16.msra.mxu0 %v1048
    %1601 = vmatpush.bf16.msra.mxu0 %v1046
    %1602 = vmatpush.bf16.msra.mxu0 %v1044
    %1603 = vmatpush.bf16.msra.mxu0 %v1042
    %1604 = vmatpush.bf16.msra.mxu0 %v1040
    %1605 = vmatpush.bf16.msra.mxu0 %v1038
    %1606 = vmatpush.bf16.msra.mxu0 %v1036
    %1607 = vmatmul.bf16.gmra.mxu0 %v1571
    %v1608 = vpop.f32.mrf.mxu0
    %v1609 = vadd.f32 0.0, %v1608
    %v1610 = vpop.f32.mrf.mxu0
    %1611 = vdwg.mxu0
    %1612 = vmatpush.bf16.msra.mxu0 %v1066
    %1613 = vmatpush.bf16.msra.mxu0 %v1064
    %1614 = vmatpush.bf16.msra.mxu0 %v1062
    %1615 = vmatpush.bf16.msra.mxu0 %v1060
    %1616 = vmatpush.bf16.msra.mxu0 %v1058
    %1617 = vmatpush.bf16.msra.mxu0 %v1056
    %1618 = vmatpush.bf16.msra.mxu0 %v1054
    %1619 = vmatpush.bf16.msra.mxu0 %v1052
    %1620 = vmatmul.bf16.gmra.mxu0 %v1572
    %v1621 = vpop.f32.mrf.mxu0
    %v1622 = vadd.f32 %v1609, %v1621
    %v1623 = vpop.f32.mrf.mxu0
    %1624 = vdwg.mxu0
    %v1625 = vadd.f32 %v872, %v1596
    %v1626 = vadd.f32 %v901, %v1622
    %v1627 = vmul.f32 %v1625, 0.5
    %v1628 = vmul.f32 %v1626, 0.5
    %v1629 = vsel %vm76, %v1625, %v1627
    %v1630 = vsel %vm77, %v1626, %v1628
    %v1631 = vtanh.pop %v1629
    %v1632 = vtanh.pop %v1630
    %v1633 = vmul.f32 %v1631, 0.5
    %v1634 = vmul.f32 %v1632, 0.5
    %v1635 = vadd.f32 %v1633, 0.5
    %v1636 = vadd.f32 %v1634, 0.5
    %v1637 = vsel %vm76, %v1631, %v1635
    %v1638 = vsel %vm77, %v1632, %v1636
    %v1639 = vmul.f32 %v1637, %v1638
    %v1640 = vmul.f32 %v1637, %v1565
    %v1641 = vmul.f32 %v1638, %v1566
    %1642 = vrot.lane.b32.xlu0 %v1639, 64
    %v1643 = vpop.permute.xlu0 %1642
    %v1644 = vadd.f32 %v1640, %v1643
    %v1645 = vadd.f32 %v1641, %v1643
    %v1646 = vtanh.pop %v1645
    %v1647 = vtanh.pop %v1644
    %v1648 = vmul.f32 %v1637, %v1646
    %v1649 = vmul.f32 %v1638, %v1647
    %v1650 = vpack.c.bf16 %v1648, %v1648
    %v1651 = vpack.c.bf16 %v1649, %v1649
    %1652 = vmatpush.bf16.msra.mxu0 %v1049
    %1653 = vmatpush.bf16.msra.mxu0 %v1047
    %1654 = vmatpush.bf16.msra.mxu0 %v1045
    %1655 = vmatpush.bf16.msra.mxu0 %v1043
    %1656 = vmatpush.bf16.msra.mxu0 %v1041
    %1657 = vmatpush.bf16.msra.mxu0 %v1039
    %1658 = vmatpush.bf16.msra.mxu0 %v1037
    %1659 = vmatpush.bf16.msra.mxu0 %v1035
    %1660 = vmatmul.bf16.gmra.mxu0 %v1650
    %v1661 = vpop.f32.mrf.mxu0
    %v1662 = vadd.f32 0.0, %v1661
    %v1663 = vpop.f32.mrf.mxu0
    %1664 = vdwg.mxu0
    %1665 = vmatpush.bf16.msra.mxu0 %v1065
    %1666 = vmatpush.bf16.msra.mxu0 %v1063
    %1667 = vmatpush.bf16.msra.mxu0 %v1061
    %1668 = vmatpush.bf16.msra.mxu0 %v1059
    %1669 = vmatpush.bf16.msra.mxu0 %v1057
    %1670 = vmatpush.bf16.msra.mxu0 %v1055
    %1671 = vmatpush.bf16.msra.mxu0 %v1053
    %1672 = vmatpush.bf16.msra.mxu0 %v1051
    %1673 = vmatmul.bf16.gmra.mxu0 %v1651
    %v1674 = vpop.f32.mrf.mxu0
    %v1675 = vadd.f32 %v1662, %v1674
    %v1676 = vpop.f32.mrf.mxu0
    %1677 = vdwg.mxu0
    %1678 = vmatpush.bf16.msra.mxu0 %v1050
    %1679 = vmatpush.bf16.msra.mxu0 %v1048
    %1680 = vmatpush.bf16.msra.mxu0 %v1046
    %1681 = vmatpush.bf16.msra.mxu0 %v1044
    %1682 = vmatpush.bf16.msra.mxu0 %v1042
    %1683 = vmatpush.bf16.msra.mxu0 %v1040
    %1684 = vmatpush.bf16.msra.mxu0 %v1038
    %1685 = vmatpush.bf16.msra.mxu0 %v1036
    %1686 = vmatmul.bf16.gmra.mxu0 %v1650
    %v1687 = vpop.f32.mrf.mxu0
    %v1688 = vadd.f32 0.0, %v1687
    %v1689 = vpop.f32.mrf.mxu0
    %1690 = vdwg.mxu0
    %1691 = vmatpush.bf16.msra.mxu0 %v1066
    %1692 = vmatpush.bf16.msra.mxu0 %v1064
    %1693 = vmatpush.bf16.msra.mxu0 %v1062
    %1694 = vmatpush.bf16.msra.mxu0 %v1060
    %1695 = vmatpush.bf16.msra.mxu0 %v1058
    %1696 = vmatpush.bf16.msra.mxu0 %v1056
    %1697 = vmatpush.bf16.msra.mxu0 %v1054
    %1698 = vmatpush.bf16.msra.mxu0 %v1052
    %1699 = vmatmul.bf16.gmra.mxu0 %v1651
    %v1700 = vpop.f32.mrf.mxu0
    %v1701 = vadd.f32 %v1688, %v1700
    %v1702 = vpop.f32.mrf.mxu0
    %1703 = vdwg.mxu0
    %v1704 = vadd.f32 %v874, %v1675
    %v1705 = vadd.f32 %v903, %v1701
    %v1706 = vmul.f32 %v1704, 0.5
    %v1707 = vmul.f32 %v1705, 0.5
    %v1708 = vsel %vm76, %v1704, %v1706
    %v1709 = vsel %vm77, %v1705, %v1707
    %v1710 = vtanh.pop %v1708
    %v1711 = vtanh.pop %v1709
    %v1712 = vmul.f32 %v1710, 0.5
    %v1713 = vmul.f32 %v1711, 0.5
    %v1714 = vadd.f32 %v1712, 0.5
    %v1715 = vadd.f32 %v1713, 0.5
    %v1716 = vsel %vm76, %v1710, %v1714
    %v1717 = vsel %vm77, %v1711, %v1715
    %v1718 = vmul.f32 %v1716, %v1717
    %v1719 = vmul.f32 %v1716, %v1644
    %v1720 = vmul.f32 %v1717, %v1645
    %1721 = vrot.lane.b32.xlu0 %v1718, 64
    %v1722 = vpop.permute.xlu0 %1721
    %v1723 = vadd.f32 %v1719, %v1722
    %v1724 = vadd.f32 %v1720, %v1722
    %v1725 = vtanh.pop %v1724
    %v1726 = vtanh.pop %v1723
    %v1727 = vmul.f32 %v1716, %v1725
    %v1728 = vmul.f32 %v1717, %v1726
    %v1729 = vpack.c.bf16 %v1253, %v1174
    %v1730 = vpack.c.bf16 %v1254, %v1175
    %v1731 = vpack.c.bf16 %v1411, %v1332
    %v1732 = vpack.c.bf16 %v1412, %v1333
    %v1733 = vpack.c.bf16 %v1569, %v1490
    %v1734 = vpack.c.bf16 %v1570, %v1491
    %v1735 = vpack.c.bf16 %v1727, %v1648
    %v1736 = vpack.c.bf16 %v1728, %v1649
    %v1737 = vld [vmem:[%s7] sm:$0xf]
    %v1738 = vld [vmem:[%s7 + $0x4] sm:$0xf]
    %v1739 = vld [vmem:[%s7 + $0x8] sm:$0xf]
    %v1740 = vld [vmem:[%s7 + $0xc] sm:$0xf]
    %v1741 = vld [vmem:[%s7 + $0x10] sm:$0xf]
    %v1742 = vld [vmem:[%s7 + $0x14] sm:$0xf]
    %v1743 = vld [vmem:[%s7 + $0x18] sm:$0xf]
    %v1744 = vld [vmem:[%s7 + $0x1c] sm:$0xf]
    %v1745 = vld [vmem:[%s7 + $0x20] sm:$0xf]
    %v1746 = vld [vmem:[%s7 + $0x24] sm:$0xf]
    %v1747 = vld [vmem:[%s7 + $0x28] sm:$0xf]
    %v1748 = vld [vmem:[%s7 + $0x2c] sm:$0xf]
    %v1749 = vld [vmem:[%s7 + $0x30] sm:$0xf]
    %v1750 = vld [vmem:[%s7 + $0x34] sm:$0xf]
    %v1751 = vld [vmem:[%s7 + $0x38] sm:$0xf]
    %v1752 = vld [vmem:[%s7 + $0x3c] sm:$0xf]
    %v1753 = vld [vmem:[%s7 + $0x40] sm:$0xf]
    %v1754 = vld [vmem:[%s7 + $0x44] sm:$0xf]
    %v1755 = vld [vmem:[%s7 + $0x48] sm:$0xf]
    %v1756 = vld [vmem:[%s7 + $0x4c] sm:$0xf]
    %v1757 = vld [vmem:[%s7 + $0x50] sm:$0xf]
    %v1758 = vld [vmem:[%s7 + $0x54] sm:$0xf]
    %v1759 = vld [vmem:[%s7 + $0x58] sm:$0xf]
    %v1760 = vld [vmem:[%s7 + $0x5c] sm:$0xf]
    %v1761 = vld [vmem:[%s7 + $0x60] sm:$0xf]
    %v1762 = vld [vmem:[%s7 + $0x64] sm:$0xf]
    %v1763 = vld [vmem:[%s7 + $0x68] sm:$0xf]
    %v1764 = vld [vmem:[%s7 + $0x6c] sm:$0xf]
    %v1765 = vld [vmem:[%s7 + $0x70] sm:$0xf]
    %v1766 = vld [vmem:[%s7 + $0x74] sm:$0xf]
    %v1767 = vld [vmem:[%s7 + $0x78] sm:$0xf]
    %v1768 = vld [vmem:[%s7 + $0x7c] sm:$0xf]
    %v1769 = vperm.slane %v65, 3
    %v1802 = vunpack.c.l.b16 %v1737
    %v1803 = vunpack.c.l.b16 %v1738
    %v1804 = vunpack.c.l.b16 %v1739
    %v1805 = vunpack.c.l.b16 %v1740
    %v1806 = vunpack.c.l.b16 %v1741
    %v1807 = vunpack.c.l.b16 %v1742
    %v1808 = vunpack.c.l.b16 %v1743
    %v1809 = vunpack.c.l.b16 %v1744
    %v1810 = vunpack.c.l.b16 %v1745
    %v1811 = vunpack.c.l.b16 %v1746
    %v1812 = vunpack.c.l.b16 %v1747
    %v1813 = vunpack.c.l.b16 %v1748
    %v1814 = vunpack.c.l.b16 %v1749
    %v1815 = vunpack.c.l.b16 %v1750
    %v1816 = vunpack.c.l.b16 %v1751
    %v1817 = vunpack.c.l.b16 %v1752
    %v1818 = vunpack.c.l.b16 %v1753
    %v1819 = vunpack.c.l.b16 %v1754
    %v1820 = vunpack.c.l.b16 %v1755
    %v1821 = vunpack.c.l.b16 %v1756
    %v1822 = vunpack.c.l.b16 %v1757
    %v1823 = vunpack.c.l.b16 %v1758
    %v1824 = vunpack.c.l.b16 %v1759
    %v1825 = vunpack.c.l.b16 %v1760
    %v1826 = vunpack.c.l.b16 %v1761
    %v1827 = vunpack.c.l.b16 %v1762
    %v1828 = vunpack.c.l.b16 %v1763
    %v1829 = vunpack.c.l.b16 %v1764
    %v1830 = vunpack.c.l.b16 %v1765
    %v1831 = vunpack.c.l.b16 %v1766
    %v1832 = vunpack.c.l.b16 %v1767
    %v1833 = vunpack.c.l.b16 %v1768
    %v1834 = vpack.c.b16 %v1803, %v1802
    %v1835 = vpack.c.b16 %v1805, %v1804
    %v1836 = vpack.c.b16 %v1807, %v1806
    %v1837 = vpack.c.b16 %v1809, %v1808
    %v1838 = vpack.c.b16 %v1811, %v1810
    %v1839 = vpack.c.b16 %v1813, %v1812
    %v1840 = vpack.c.b16 %v1815, %v1814
    %v1841 = vpack.c.b16 %v1817, %v1816
    %v1842 = vpack.c.b16 %v1819, %v1818
    %v1843 = vpack.c.b16 %v1821, %v1820
    %v1844 = vpack.c.b16 %v1823, %v1822
    %v1845 = vpack.c.b16 %v1825, %v1824
    %v1846 = vpack.c.b16 %v1827, %v1826
    %v1847 = vpack.c.b16 %v1829, %v1828
    %v1848 = vpack.c.b16 %v1831, %v1830
    %v1849 = vpack.c.b16 %v1833, %v1832
    %1866 = vmatpush.bf16.msra.mxu0 %v1841
    %1867 = vmatpush.bf16.msra.mxu0 %v1840
    %1868 = vmatpush.bf16.msra.mxu0 %v1839
    %1869 = vmatpush.bf16.msra.mxu0 %v1838
    %1870 = vmatpush.bf16.msra.mxu0 %v1837
    %1871 = vmatpush.bf16.msra.mxu0 %v1836
    %1872 = vmatpush.bf16.msra.mxu0 %v1835
    %1873 = vmatpush.bf16.msra.mxu0 %v1834
    %1874 = vmatmul.bf16.gmra.mxu0 %v1729
    %v1875 = vpop.f32.mrf.mxu0
    %v1876 = vadd.f32 %v1769, %v1875
    %v1877 = vpop.f32.mrf.mxu0
    %v1878 = vadd.f32 %v1769, %v1877
    %1879 = vmatmul.bf16.gmra.mxu0 %v1731
    %v1880 = vpop.f32.mrf.mxu0
    %v1881 = vadd.f32 %v1769, %v1880
    %v1882 = vpop.f32.mrf.mxu0
    %v1883 = vadd.f32 %v1769, %v1882
    %1884 = vmatmul.bf16.gmra.mxu0 %v1733
    %v1885 = vpop.f32.mrf.mxu0
    %v1886 = vadd.f32 %v1769, %v1885
    %v1887 = vpop.f32.mrf.mxu0
    %v1888 = vadd.f32 %v1769, %v1887
    %1889 = vmatmul.bf16.gmra.mxu0 %v1735
    %v1890 = vpop.f32.mrf.mxu0
    %v1891 = vadd.f32 %v1769, %v1890
    %v1892 = vpop.f32.mrf.mxu0
    %v1893 = vadd.f32 %v1769, %v1892
    %1894 = vdwg.mxu0
    %1895 = vmatpush.bf16.msra.mxu0 %v1849
    %1896 = vmatpush.bf16.msra.mxu0 %v1848
    %1897 = vmatpush.bf16.msra.mxu0 %v1847
    %1898 = vmatpush.bf16.msra.mxu0 %v1846
    %1899 = vmatpush.bf16.msra.mxu0 %v1845
    %1900 = vmatpush.bf16.msra.mxu0 %v1844
    %1901 = vmatpush.bf16.msra.mxu0 %v1843
    %1902 = vmatpush.bf16.msra.mxu0 %v1842
    %1903 = vmatmul.bf16.gmra.mxu0 %v1730
    %v1904 = vpop.f32.mrf.mxu0
    %v1905 = vadd.f32 %v1876, %v1904
    %v1906 = vpop.f32.mrf.mxu0
    %v1907 = vadd.f32 %v1878, %v1906
    %1908 = vmatmul.bf16.gmra.mxu0 %v1732
    %v1909 = vpop.f32.mrf.mxu0
    %v1910 = vadd.f32 %v1881, %v1909
    %v1911 = vpop.f32.mrf.mxu0
    %v1912 = vadd.f32 %v1883, %v1911
    %1913 = vmatmul.bf16.gmra.mxu0 %v1734
    %v1914 = vpop.f32.mrf.mxu0
    %v1915 = vadd.f32 %v1886, %v1914
    %v1916 = vpop.f32.mrf.mxu0
    %v1917 = vadd.f32 %v1888, %v1916
    %1918 = vmatmul.bf16.gmra.mxu0 %v1736
    %v1919 = vpop.f32.mrf.mxu0
    %v1920 = vadd.f32 %v1891, %v1919
    %v1921 = vpop.f32.mrf.mxu0
    %v1922 = vadd.f32 %v1893, %v1921
    %1923 = vdwg.mxu0
    %1924 = vst [vmem:[%s9] sm:$0xff] %v1905
    %1925 = vst [vmem:[%s9 + $0x8] sm:$0xff] %v1907
    %1926 = vst [vmem:[%s9 + $0x10] sm:$0xff] %v1910
    %1927 = vst [vmem:[%s9 + $0x18] sm:$0xff] %v1912
    %1928 = vst [vmem:[%s9 + $0x20] sm:$0xff] %v1915
    %1929 = vst [vmem:[%s9 + $0x28] sm:$0xff] %v1917
    %1930 = vst [vmem:[%s9 + $0x30] sm:$0xff] %v1920
    %1931 = vst [vmem:[%s9 + $0x38] sm:$0xff] %v1922
    // Predicated region
    $region46: #{lstm_lm_bowman_forward.1} parent=1 // pred_check
      _
    $region47: #{lstm_lm_bowman_forward.1} parent=1 // pred_check_branch
      %1933 = sbr.rel (0) target = $region49
    $region48: #{lstm_lm_bowman_forward.1} parent=1 // pred_region
      _
    $region49: #{lstm_lm_bowman_forward.1} parent=1 // pred_fallthru
      _
    // Predicated region
    $region50: #{lstm_lm_bowman_forward.1} parent=1 // pred_check
      _
    $region51: #{lstm_lm_bowman_forward.1} parent=1 // pred_check_branch
      %1935 = sbr.rel (0) target = $region53
    $region52: #{lstm_lm_bowman_forward.1} parent=1 // pred_region
      _
    $region53: #{lstm_lm_bowman_forward.1} parent=1 // pred_fallthru
      _
    %1936 = vsyncpa [#allocation3], 1
    %1937 = vsyncpa [#allocation5], 1

</llo_original>
